<compile_context>
chip_gen: v5e
topology: v5e:2x2
jax: 0.10.0
libtpu: 0.0.40
codegen_flags: <defaults>
</compile_context>

<pallas_src>
import functools

import jax
import jax.numpy as jnp
from jax.experimental import pallas as pl
from jax.experimental.pallas import tpu as pltpu


# --------------------------- model config (mini BERT) ----------------------
# Small synthetic BERT config (bert-base is 12x768; this is a scaled-down
# deterministic stand-in with identical forward-pass structure).
VOCAB = 50
HIDDEN = 32
N_HEADS = 4
HEAD_DIM = HIDDEN // N_HEADS
INTERMEDIATE = 64
N_LAYERS = 2
MAX_POS = 16
N_CLASSES = 3
HEAD_PAD = 128          # classifier head padded to a full lane width


# ------------------------------ in-kernel helpers --------------------------


def _ln(x, g, b):
    """Layernorm over the last dim (BERT eps=1e-12), f32 VPU math."""
    mu = jnp.mean(x, axis=-1, keepdims=True)
    d = x - mu
    var = jnp.mean(d * d, axis=-1, keepdims=True)
    return d * jax.lax.rsqrt(var + 1e-12) * g + b


def _gelu(y):
    # TODO(synk): HF BERT default is exact erf-GELU; tanh approximation kept
    # (erf has no guaranteed Mosaic lowering), drift ~1e-3.
    c = 0.7978845608028654  # sqrt(2/pi)
    return 0.5 * y * (1.0 + jnp.tanh(c * (y + 0.044715 * y * y * y)))


# ----------------------------- Pallas kernels ------------------------------


def _layernorm_kernel(x_ref, g_ref, b_ref, o_ref):
    o_ref[...] = _ln(x_ref[...], g_ref[...], b_ref[...])


def pallas_layernorm(x, gamma2d, beta2d):
    """x: (M, H); gamma2d/beta2d: (1, H)."""
    M, H = x.shape
    return pl.pallas_call(
        _layernorm_kernel,
        out_shape=jax.ShapeDtypeStruct((M, H), jnp.float32),
        in_specs=[
            pl.BlockSpec((M, H), lambda: (0, 0)),
            pl.BlockSpec((1, H), lambda: (0, 0)),
            pl.BlockSpec((1, H), lambda: (0, 0)),
        ],
        out_specs=pl.BlockSpec((M, H), lambda: (0, 0)),
    )(x, gamma2d, beta2d)


def _encoder_layer_kernel(
    h_ref, mask_ref,
    qkv_w_ref, qkv_b_ref,
    ao_w_ref, ao_b_ref, ln1_g_ref, ln1_b_ref,
    ff1_w_ref, ff1_b_ref, ff2_w_ref, ff2_b_ref, ln2_g_ref, ln2_b_ref,
    o_ref,
    ctx_scratch,
    *, scale,
):
    """One batch element per grid program; everything stays in VMEM/vregs."""
    h = h_ref[0]             # (S, HIDDEN)
    mask = mask_ref[0]       # (1, S) additive (-10000 * (1 - m)), broadcast over query rows

    # ---- fused Q/K/V projection: one MXU pass, (S, 3*HIDDEN) ----
    qkv = jnp.dot(h, qkv_w_ref[...], preferred_element_type=jnp.float32) + qkv_b_ref[...]

    # ---- multi-head self-attention (static head loop at this toy size) ----
    # TODO(synk): at real BERT sizes pack heads into the lane dim / batched einsum
    # instead of (S, HEAD_DIM)=(8,8) sub-vreg tiles.
    for hd in range(N_HEADS):
        lo = hd * HEAD_DIM
        q_h = qkv[:, lo:lo + HEAD_DIM]
        k_h = qkv[:, HIDDEN + lo:HIDDEN + lo + HEAD_DIM]
        v_h = qkv[:, 2 * HIDDEN + lo:2 * HIDDEN + lo + HEAD_DIM]
        # scores via contracting-dim dot_general (no explicit k.T / XLU transpose)
        s = jax.lax.dot_general(
            q_h, k_h, (((1,), (1,)), ((), ())),
            preferred_element_type=jnp.float32,
        ) * scale + mask
        s = s - jnp.max(s, axis=-1, keepdims=True)
        p = jnp.exp(s)
        p = p * pl.reciprocal(jnp.sum(p, axis=-1, keepdims=True), approx=True)
        ctx_scratch[:, lo:lo + HEAD_DIM] = jnp.dot(
            p, v_h, preferred_element_type=jnp.float32)
    ctx = ctx_scratch[...]   # (S, HIDDEN)

    # ---- attention output proj + residual + LN1 (fused epilogue) ----
    attn_out = jnp.dot(ctx, ao_w_ref[...],
                       preferred_element_type=jnp.float32) + ao_b_ref[...]
    h1 = _ln(h + attn_out, ln1_g_ref[...], ln1_b_ref[...])

    # ---- FFN (GELU) + residual + LN2 (fused epilogue) ----
    ff = jnp.dot(h1, ff1_w_ref[...],
                 preferred_element_type=jnp.float32) + ff1_b_ref[...]
    ff = _gelu(ff)
    ff2 = jnp.dot(ff, ff2_w_ref[...],
                  preferred_element_type=jnp.float32) + ff2_b_ref[...]
    o_ref[0] = _ln(h1 + ff2, ln2_g_ref[...], ln2_b_ref[...])


def pallas_encoder_layer(h3, mask_add, lp):
    """h3: (B, S, HIDDEN) f32; mask_add: (B, 1, S) additive f32; lp: prepared layer params."""
    B, S, H = h3.shape
    kern = functools.partial(_encoder_layer_kernel, scale=1.0 / (HEAD_DIM ** 0.5))
    wspec = lambda shape: pl.BlockSpec(shape, lambda b: (0, 0))
    return pl.pallas_call(
        kern,
        out_shape=jax.ShapeDtypeStruct((B, S, H), jnp.float32),
        grid=(B,),
        in_specs=[
            pl.BlockSpec((1, S, H), lambda b: (b, 0, 0)),      # hidden slab (per batch)
            pl.BlockSpec((1, 1, S), lambda b: (b, 0, 0)),      # additive mask row
            wspec((H, 3 * H)), wspec((1, 3 * H)),              # fused qkv
            wspec((H, H)), wspec((1, H)),                      # attn out proj
            wspec((1, H)), wspec((1, H)),                      # ln1
            wspec((H, INTERMEDIATE)), wspec((1, INTERMEDIATE)),  # ff1
            wspec((INTERMEDIATE, H)), wspec((1, H)),           # ff2
            wspec((1, H)), wspec((1, H)),                      # ln2
        ],
        out_specs=pl.BlockSpec((1, S, H), lambda b: (b, 0, 0)),
        scratch_shapes=[pltpu.VMEM((S, H), jnp.float32)],
        compiler_params=pltpu.CompilerParams(dimension_semantics=("parallel",)),
    )(
        h3, mask_add,
        lp["qkv_w"], lp["qkv_b"],
        lp["ao_w"], lp["ao_b"], lp["ln1_g"], lp["ln1_b"],
        lp["ff1_w"], lp["ff1_b"], lp["ff2_w"], lp["ff2_b"],
        lp["ln2_g"], lp["ln2_b"],
    )


def _pool_head_kernel(cls_ref, pw_ref, pb_ref, ow_ref, ob_ref, o_ref):
    """pooled = tanh(cls @ pool_w + b); logits = pooled @ out_w_pad + out_b_pad."""
    pooled = jnp.tanh(
        jnp.dot(cls_ref[...], pw_ref[...], preferred_element_type=jnp.float32)
        + pb_ref[...]
    )
    # TODO(synk): self.drop (p=0.5) is identity at inference; training-mode dropout omitted.
    o_ref[...] = (
        jnp.dot(pooled, ow_ref[...], preferred_element_type=jnp.float32) + ob_ref[...]
    )


def pallas_pool_head(cls, pool_w, pool_b, out_w_pad, out_b_pad):
    B, H = cls.shape
    NP = out_w_pad.shape[1]
    return pl.pallas_call(
        _pool_head_kernel,
        out_shape=jax.ShapeDtypeStruct((B, NP), jnp.float32),
        in_specs=[
            pl.BlockSpec((B, H), lambda: (0, 0)),
            pl.BlockSpec((H, H), lambda: (0, 0)),
            pl.BlockSpec((1, H), lambda: (0, 0)),
            pl.BlockSpec((H, NP), lambda: (0, 0)),
            pl.BlockSpec((1, NP), lambda: (0, 0)),
        ],
        out_specs=pl.BlockSpec((B, NP), lambda: (0, 0)),
    )(cls, pool_w, pool_b, out_w_pad, out_b_pad)


# --------------------------- parameters & prepare ---------------------------


def init_params(key):
    def nrm(k, shape, std=0.02):
        return (std * jax.random.normal(k, shape)).astype(jnp.float32)

    keys = iter(jax.random.split(key, 128))
    p = {
        "word_emb": nrm(next(keys), (VOCAB, HIDDEN)),
        "pos_emb": nrm(next(keys), (MAX_POS, HIDDEN)),
        "type_emb": nrm(next(keys), (2, HIDDEN)),
        "emb_ln_g": jnp.ones((HIDDEN,), jnp.float32),
        "emb_ln_b": jnp.zeros((HIDDEN,), jnp.float32),
        "layers": [],
        "pool_w": nrm(next(keys), (HIDDEN, HIDDEN)),
        "pool_b": jnp.zeros((HIDDEN,), jnp.float32),
        "out_w": nrm(next(keys), (HIDDEN, N_CLASSES)),
        "out_b": jnp.zeros((N_CLASSES,), jnp.float32),
    }
    for _ in range(N_LAYERS):
        lp = {
            "q_w": nrm(next(keys), (HIDDEN, HIDDEN)),
            "q_b": jnp.zeros((HIDDEN,), jnp.float32),
            "k_w": nrm(next(keys), (HIDDEN, HIDDEN)),
            "k_b": jnp.zeros((HIDDEN,), jnp.float32),
            "v_w": nrm(next(keys), (HIDDEN, HIDDEN)),
            "v_b": jnp.zeros((HIDDEN,), jnp.float32),
            "ao_w": nrm(next(keys), (HIDDEN, HIDDEN)),
            "ao_b": jnp.zeros((HIDDEN,), jnp.float32),
            "ln1_g": jnp.ones((HIDDEN,), jnp.float32),
            "ln1_b": jnp.zeros((HIDDEN,), jnp.float32),
            "ff1_w": nrm(next(keys), (HIDDEN, INTERMEDIATE)),
            "ff1_b": jnp.zeros((INTERMEDIATE,), jnp.float32),
            "ff2_w": nrm(next(keys), (INTERMEDIATE, HIDDEN)),
            "ff2_b": jnp.zeros((HIDDEN,), jnp.float32),
            "ln2_g": jnp.ones((HIDDEN,), jnp.float32),
            "ln2_b": jnp.zeros((HIDDEN,), jnp.float32),
        }
        p["layers"].append(lp)
    return p


def prepare_params(p):
    """Fuse/reshape/pad weights once, outside the jit-traced hot path."""
    row = lambda v: v.reshape(1, -1)
    prep = {
        "word_emb": p["word_emb"],
        "pos_emb": p["pos_emb"],
        "type_emb": p["type_emb"],
        "emb_ln_g": row(p["emb_ln_g"]),
        "emb_ln_b": row(p["emb_ln_b"]),
        "pool_w": p["pool_w"],
        "pool_b": row(p["pool_b"]),
        # classifier head zero-padded to a full 128-lane output (lane-dense stores)
        "out_w_pad": jnp.zeros((HIDDEN, HEAD_PAD), jnp.float32).at[:, :N_CLASSES].set(p["out_w"]),
        "out_b_pad": jnp.zeros((1, HEAD_PAD), jnp.float32).at[:, :N_CLASSES].set(p["out_b"]),
        "layers": [],
    }
    for lp in p["layers"]:
        prep["layers"].append({
            "qkv_w": jnp.concatenate([lp["q_w"], lp["k_w"], lp["v_w"]], axis=1),
            "qkv_b": jnp.concatenate([lp["q_b"], lp["k_b"], lp["v_b"]]).reshape(1, -1),
            "ao_w": lp["ao_w"], "ao_b": row(lp["ao_b"]),
            "ln1_g": row(lp["ln1_g"]), "ln1_b": row(lp["ln1_b"]),
            "ff1_w": lp["ff1_w"], "ff1_b": row(lp["ff1_b"]),
            "ff2_w": lp["ff2_w"], "ff2_b": row(lp["ff2_b"]),
            "ln2_g": row(lp["ln2_g"]), "ln2_b": row(lp["ln2_b"]),
        })
    return prep


# --------------------------------- forward ---------------------------------


def sentiment_classifier_forward(prep, input_ids, attention_mask):
    """Mirrors SentimentClassifier.forward: bert -> dropout(eval) -> linear head."""
    B, S = input_ids.shape

    # --- embeddings (gather is glue; layernorm runs in a Pallas kernel) ---
    h = (
        jnp.take(prep["word_emb"], input_ids, axis=0)
        + prep["pos_emb"][:S][None, :, :]
        + prep["type_emb"][0][None, None, :]          # token_type_ids = 0
    ).astype(jnp.float32)
    h2d = pallas_layernorm(h.reshape(B * S, HIDDEN), prep["emb_ln_g"], prep["emb_ln_b"])
    h3 = h2d.reshape(B, S, HIDDEN)

    # --- additive attention mask row, BERT-style, broadcast inside the kernel ---
    mask_add = ((1.0 - attention_mask.astype(jnp.float32)) * -10000.0).reshape(B, 1, S)

    # --- fused encoder stack: one pallas_call per layer ---
    for lp in prep["layers"]:
        h3 = pallas_encoder_layer(h3, mask_add, lp)

    # --- pooler (tanh on [CLS]) + dropout(identity) + classifier head, fused ---
    cls = h3[:, 0, :]
    logits_pad = pallas_pool_head(
        cls, prep["pool_w"], prep["pool_b"], prep["out_w_pad"], prep["out_b_pad"]
    )
    return logits_pad[:, :N_CLASSES]


if __name__ == "__main__":
    key = jax.random.PRNGKey(0)
    pkey, ikey = jax.random.split(key)

    params = init_params(pkey)
    prep = prepare_params(params)

    B, S = 2, 8
    input_ids = jax.random.randint(ikey, (B, S), 0, VOCAB, dtype=jnp.int32)
    # second sequence has 2 padding positions masked out
    attention_mask = jnp.array(
        [[1, 1, 1, 1, 1, 1, 1, 1],
         [1, 1, 1, 1, 1, 1, 0, 0]], dtype=jnp.int32
    )

    logits = jax.jit(sentiment_classifier_forward)(prep, input_ids, attention_mask)
    jax.block_until_ready(logits)
    assert logits.shape == (B, N_CLASSES) and logits.dtype == jnp.float32
    print("KERNEL_OK")
</pallas_src>

<mosaic_0001>
module attributes {stable_mosaic.version = 11 : i64} {
  func.func @_layernorm_kernel(%arg0: memref<16x32xf32, #tpu.memory_space<vmem>>, %arg1: memref<1x32xf32, #tpu.memory_space<vmem>>, %arg2: memref<1x32xf32, #tpu.memory_space<vmem>>, %arg3: memref<16x32xf32, #tpu.memory_space<vmem>>) attributes {dimension_semantics = [], scalar_prefetch = 0 : i64, scratch_operands = 0 : i64, tpu.core_type = #tpu.core_type<tc>} {
    %c0 = arith.constant 0 : index
    %c0_0 = arith.constant 0 : index
    %0 = vector.load %arg0[%c0, %c0_0] : memref<16x32xf32, #tpu.memory_space<vmem>>, vector<16x32xf32>
    %c0_1 = arith.constant 0 : index
    %c0_2 = arith.constant 0 : index
    %1 = vector.load %arg1[%c0_1, %c0_2] : memref<1x32xf32, #tpu.memory_space<vmem>>, vector<1x32xf32>
    %c0_3 = arith.constant 0 : index
    %c0_4 = arith.constant 0 : index
    %2 = vector.load %arg2[%c0_3, %c0_4] : memref<1x32xf32, #tpu.memory_space<vmem>>, vector<1x32xf32>
    %cst = arith.constant dense<0.000000e+00> : vector<16xf32>
    %3 = vector.multi_reduction <add>, %0, %cst [1] : vector<16x32xf32> to vector<16xf32>
    %4 = vector.shape_cast %3 : vector<16xf32> to vector<16x1xf32>
    %cst_5 = arith.constant 3.200000e+01 : f32
    %5 = vector.broadcast %cst_5 : f32 to vector<16x1xf32>
    %6 = arith.divf %4, %5 : vector<16x1xf32>
    %7 = vector.broadcast %6 : vector<16x1xf32> to vector<16x32xf32>
    %8 = arith.subf %0, %7 : vector<16x32xf32>
    %9 = arith.mulf %8, %8 : vector<16x32xf32>
    %cst_6 = arith.constant dense<0.000000e+00> : vector<16xf32>
    %10 = vector.multi_reduction <add>, %9, %cst_6 [1] : vector<16x32xf32> to vector<16xf32>
    %11 = vector.shape_cast %10 : vector<16xf32> to vector<16x1xf32>
    %cst_7 = arith.constant 3.200000e+01 : f32
    %12 = vector.broadcast %cst_7 : f32 to vector<16x1xf32>
    %13 = arith.divf %11, %12 : vector<16x1xf32>
    %cst_8 = arith.constant 9.99999996E-13 : f32
    %14 = vector.broadcast %cst_8 : f32 to vector<16x1xf32>
    %15 = arith.addf %13, %14 : vector<16x1xf32>
    %16 = math.rsqrt %15 : vector<16x1xf32>
    %17 = vector.broadcast %16 : vector<16x1xf32> to vector<16x32xf32>
    %18 = arith.mulf %8, %17 : vector<16x32xf32>
    %19 = vector.broadcast %1 : vector<1x32xf32> to vector<16x32xf32>
    %20 = arith.mulf %18, %19 : vector<16x32xf32>
    %21 = vector.broadcast %2 : vector<1x32xf32> to vector<16x32xf32>
    %22 = arith.addf %20, %21 : vector<16x32xf32>
    %c0_9 = arith.constant 0 : index
    %c0_10 = arith.constant 0 : index
    %23 = vector.load %arg3[%c0_9, %c0_10] : memref<16x32xf32, #tpu.memory_space<vmem>>, vector<16x32xf32>
    tpu.vector_store %arg3[%c0_9, %c0_10], %22 {strides = array<i32>} : memref<16x32xf32, #tpu.memory_space<vmem>>, vector<16x32xf32>,
    return
  }
}

module attributes {stable_mosaic.version = 11 : i64} {
  func.func @_pool_head_kernel(%arg0: memref<2x32xf32, #tpu.memory_space<vmem>>, %arg1: memref<32x32xf32, #tpu.memory_space<vmem>>, %arg2: memref<1x32xf32, #tpu.memory_space<vmem>>, %arg3: memref<32x128xf32, #tpu.memory_space<vmem>>, %arg4: memref<1x128xf32, #tpu.memory_space<vmem>>, %arg5: memref<2x128xf32, #tpu.memory_space<vmem>>) attributes {dimension_semantics = [], scalar_prefetch = 0 : i64, scratch_operands = 0 : i64, tpu.core_type = #tpu.core_type<tc>} {
    %c0 = arith.constant 0 : index
    %c0_0 = arith.constant 0 : index
    %0 = vector.load %arg0[%c0, %c0_0] : memref<2x32xf32, #tpu.memory_space<vmem>>, vector<2x32xf32>
    %c0_1 = arith.constant 0 : index
    %c0_2 = arith.constant 0 : index
    %1 = vector.load %arg1[%c0_1, %c0_2] : memref<32x32xf32, #tpu.memory_space<vmem>>, vector<32x32xf32>
    %cst = arith.constant dense<0.000000e+00> : vector<2x32xf32>
    %2 = tpu.matmul %0, %1, %cst {dimension_numbers = #tpu.dot_dimension_numbers<[1], [0], [0], [1], [0, 0, 1, 1], [], []>} : vector<2x32xf32>, vector<32x32xf32>, vector<2x32xf32> -> vector<2x32xf32>
    %c0_3 = arith.constant 0 : index
    %c0_4 = arith.constant 0 : index
    %3 = vector.load %arg2[%c0_3, %c0_4] : memref<1x32xf32, #tpu.memory_space<vmem>>, vector<1x32xf32>
    %4 = vector.broadcast %3 : vector<1x32xf32> to vector<2x32xf32>
    %5 = arith.addf %2, %4 : vector<2x32xf32>
    %6 = math.tanh %5 : vector<2x32xf32>
    %c0_5 = arith.constant 0 : index
    %c0_6 = arith.constant 0 : index
    %7 = vector.load %arg3[%c0_5, %c0_6] : memref<32x128xf32, #tpu.memory_space<vmem>>, vector<32x128xf32>
    %cst_7 = arith.constant dense<0.000000e+00> : vector<2x128xf32>
    %8 = tpu.matmul %6, %7, %cst_7 {dimension_numbers = #tpu.dot_dimension_numbers<[1], [0], [0], [1], [0, 0, 1, 1], [], []>} : vector<2x32xf32>, vector<32x128xf32>, vector<2x128xf32> -> vector<2x128xf32>
    %c0_8 = arith.constant 0 : index
    %c0_9 = arith.constant 0 : index
    %9 = vector.load %arg4[%c0_8, %c0_9] : memref<1x128xf32, #tpu.memory_space<vmem>>, vector<1x128xf32>
    %10 = vector.broadcast %9 : vector<1x128xf32> to vector<2x128xf32>
    %11 = arith.addf %8, %10 : vector<2x128xf32>
    %c0_10 = arith.constant 0 : index
    %c0_11 = arith.constant 0 : index
    %12 = vector.load %arg5[%c0_10, %c0_11] : memref<2x128xf32, #tpu.memory_space<vmem>>, vector<2x128xf32>
    tpu.vector_store %arg5[%c0_10, %c0_11], %11 {strides = array<i32>} : memref<2x128xf32, #tpu.memory_space<vmem>>, vector<2x128xf32>,
    return
  }
}

module attributes {stable_mosaic.version = 11 : i64} {
  func.func @_encoder_layer_kernel(%arg0: i32, %arg1: memref<1x8x32xf32, #tpu.memory_space<vmem>>, %arg2: memref<1x1x8xf32, #tpu.memory_space<vmem>>, %arg3: memref<32x96xf32, #tpu.memory_space<vmem>>, %arg4: memref<1x96xf32, #tpu.memory_space<vmem>>, %arg5: memref<32x32xf32, #tpu.memory_space<vmem>>, %arg6: memref<1x32xf32, #tpu.memory_space<vmem>>, %arg7: memref<1x32xf32, #tpu.memory_space<vmem>>, %arg8: memref<1x32xf32, #tpu.memory_space<vmem>>, %arg9: memref<32x64xf32, #tpu.memory_space<vmem>>, %arg10: memref<1x64xf32, #tpu.memory_space<vmem>>, %arg11: memref<64x32xf32, #tpu.memory_space<vmem>>, %arg12: memref<1x32xf32, #tpu.memory_space<vmem>>, %arg13: memref<1x32xf32, #tpu.memory_space<vmem>>, %arg14: memref<1x32xf32, #tpu.memory_space<vmem>>, %arg15: memref<1x8x32xf32, #tpu.memory_space<vmem>>, %arg16: memref<8x32xf32, #tpu.memory_space<vmem>>) attributes {dimension_semantics = [#tpu.dimension_semantics<parallel>], iteration_bounds = array<i64: 2>, scalar_prefetch = 0 : i64, scratch_operands = 1 : i64, tpu.core_type = #tpu.core_type<tc>, window_params = [{transform_indices = @transform_0, window_bounds = array<i64: 1, 8, 32>}, {transform_indices = @transform_1, window_bounds = array<i64: 1, 1, 8>}, {pipeline_mode = #tpu.pipeline_mode<synchronous>, transform_indices = @transform_2, window_bounds = array<i64: 32, 96>}, {pipeline_mode = #tpu.pipeline_mode<synchronous>, transform_indices = @transform_3, window_bounds = array<i64: 1, 96>}, {pipeline_mode = #tpu.pipeline_mode<synchronous>, transform_indices = @transform_4, window_bounds = array<i64: 32, 32>}, {pipeline_mode = #tpu.pipeline_mode<synchronous>, transform_indices = @transform_5, window_bounds = array<i64: 1, 32>}, {pipeline_mode = #tpu.pipeline_mode<synchronous>, transform_indices = @transform_6, window_bounds = array<i64: 1, 32>}, {pipeline_mode = #tpu.pipeline_mode<synchronous>, transform_indices = @transform_7, window_bounds = array<i64: 1, 32>}, {pipeline_mode = #tpu.pipeline_mode<synchronous>, transform_indices = @transform_8, window_bounds = array<i64: 32, 64>}, {pipeline_mode = #tpu.pipeline_mode<synchronous>, transform_indices = @transform_9, window_bounds = array<i64: 1, 64>}, {pipeline_mode = #tpu.pipeline_mode<synchronous>, transform_indices = @transform_10, window_bounds = array<i64: 64, 32>}, {pipeline_mode = #tpu.pipeline_mode<synchronous>, transform_indices = @transform_11, window_bounds = array<i64: 1, 32>}, {pipeline_mode = #tpu.pipeline_mode<synchronous>, transform_indices = @transform_12, window_bounds = array<i64: 1, 32>}, {pipeline_mode = #tpu.pipeline_mode<synchronous>, transform_indices = @transform_13, window_bounds = array<i64: 1, 32>}, {transform_indices = @transform_14, window_bounds = array<i64: 1, 8, 32>}]} {
    %c0 = arith.constant 0 : index
    %c0_0 = arith.constant 0 : index
    %c0_1 = arith.constant 0 : index
    %0 = vector.load %arg1[%c0, %c0_0, %c0_1] : memref<1x8x32xf32, #tpu.memory_space<vmem>>, vector<1x8x32xf32>
    %1 = vector.shape_cast %0 : vector<1x8x32xf32> to vector<8x32xf32>
    %c0_2 = arith.constant 0 : index
    %c0_3 = arith.constant 0 : index
    %c0_4 = arith.constant 0 : index
    %2 = vector.load %arg2[%c0_2, %c0_3, %c0_4] : memref<1x1x8xf32, #tpu.memory_space<vmem>>, vector<1x1x8xf32>
    %3 = vector.shape_cast %2 : vector<1x1x8xf32> to vector<1x8xf32>
    %c0_5 = arith.constant 0 : index
    %c0_6 = arith.constant 0 : index
    %4 = vector.load %arg3[%c0_5, %c0_6] : memref<32x96xf32, #tpu.memory_space<vmem>>, vector<32x96xf32>
    %cst = arith.constant dense<0.000000e+00> : vector<8x96xf32>
    %5 = tpu.matmul %1, %4, %cst {dimension_numbers = #tpu.dot_dimension_numbers<[1], [0], [0], [1], [0, 0, 1, 1], [], []>} : vector<8x32xf32>, vector<32x96xf32>, vector<8x96xf32> -> vector<8x96xf32>
    %c0_7 = arith.constant 0 : index
    %c0_8 = arith.constant 0 : index
    %6 = vector.load %arg4[%c0_7, %c0_8] : memref<1x96xf32, #tpu.memory_space<vmem>>, vector<1x96xf32>
    %7 = vector.broadcast %6 : vector<1x96xf32> to vector<8x96xf32>
    %8 = arith.addf %5, %7 : vector<8x96xf32>
    %9 = vector.extract_strided_slice %8 {offsets = [0, 0], sizes = [8, 8], strides = [1, 1]} : vector<8x96xf32> to vector<8x8xf32>
    %10 = vector.extract_strided_slice %8 {offsets = [0, 32], sizes = [8, 8], strides = [1, 1]} : vector<8x96xf32> to vector<8x8xf32>
    %11 = vector.extract_strided_slice %8 {offsets = [0, 64], sizes = [8, 8], strides = [1, 1]} : vector<8x96xf32> to vector<8x8xf32>
    %cst_9 = arith.constant dense<0.000000e+00> : vector<8x8xf32>
    %12 = tpu.matmul %9, %10, %cst_9 {dimension_numbers = #tpu.dot_dimension_numbers<[1], [1], [0], [0], [0, 0, 1, 0], [], []>} : vector<8x8xf32>, vector<8x8xf32>, vector<8x8xf32> -> vector<8x8xf32>
    %cst_10 = arith.constant 0.353553385 : f32
    %13 = vector.broadcast %cst_10 : f32 to vector<8x8xf32>
    %14 = arith.mulf %12, %13 : vector<8x8xf32>
    %15 = vector.broadcast %3 : vector<1x8xf32> to vector<8x8xf32>
    %16 = arith.addf %14, %15 : vector<8x8xf32>
    %cst_11 = arith.constant dense<0xFF800000> : vector<8xf32>
    %17 = vector.multi_reduction <maximumf>, %16, %cst_11 [1] : vector<8x8xf32> to vector<8xf32>
    %18 = vector.shape_cast %17 : vector<8xf32> to vector<8x1xf32>
    %19 = vector.broadcast %18 : vector<8x1xf32> to vector<8x8xf32>
    %20 = arith.subf %16, %19 : vector<8x8xf32>
    %21 = math.exp %20 : vector<8x8xf32>
    %cst_12 = arith.constant dense<0.000000e+00> : vector<8xf32>
    %22 = vector.multi_reduction <add>, %21, %cst_12 [1] : vector<8x8xf32> to vector<8xf32>
    %23 = vector.shape_cast %22 : vector<8xf32> to vector<8x1xf32>
    %24 = tpu.reciprocal %23 {approx = true} : vector<8x1xf32> -> vector<8x1xf32>
    %25 = vector.broadcast %24 : vector<8x1xf32> to vector<8x8xf32>
    %26 = arith.mulf %21, %25 : vector<8x8xf32>
    %cst_13 = arith.constant dense<0.000000e+00> : vector<8x8xf32>
    %27 = tpu.matmul %26, %11, %cst_13 {dimension_numbers = #tpu.dot_dimension_numbers<[1], [0], [0], [1], [0, 0, 1, 1], [], []>} : vector<8x8xf32>, vector<8x8xf32>, vector<8x8xf32> -> vector<8x8xf32>
    %c0_14 = arith.constant 0 : index
    %c0_15 = arith.constant 0 : index
    %28 = vector.load %arg16[%c0_14, %c0_15] : memref<8x32xf32, #tpu.memory_space<vmem>>, vector<8x8xf32>
    tpu.vector_store %arg16[%c0_14, %c0_15], %27 {strides = array<i32>} : memref<8x32xf32, #tpu.memory_space<vmem>>, vector<8x8xf32>,
    %29 = vector.extract_strided_slice %8 {offsets = [0, 8], sizes = [8, 8], strides = [1, 1]} : vector<8x96xf32> to vector<8x8xf32>
    %30 = vector.extract_strided_slice %8 {offsets = [0, 40], sizes = [8, 8], strides = [1, 1]} : vector<8x96xf32> to vector<8x8xf32>
    %31 = vector.extract_strided_slice %8 {offsets = [0, 72], sizes = [8, 8], strides = [1, 1]} : vector<8x96xf32> to vector<8x8xf32>
    %cst_16 = arith.constant dense<0.000000e+00> : vector<8x8xf32>
    %32 = tpu.matmul %29, %30, %cst_16 {dimension_numbers = #tpu.dot_dimension_numbers<[1], [1], [0], [0], [0, 0, 1, 0], [], []>} : vector<8x8xf32>, vector<8x8xf32>, vector<8x8xf32> -> vector<8x8xf32>
    %cst_17 = arith.constant 0.353553385 : f32
    %33 = vector.broadcast %cst_17 : f32 to vector<8x8xf32>
    %34 = arith.mulf %32, %33 : vector<8x8xf32>
    %35 = vector.broadcast %3 : vector<1x8xf32> to vector<8x8xf32>
    %36 = arith.addf %34, %35 : vector<8x8xf32>
    %cst_18 = arith.constant dense<0xFF800000> : vector<8xf32>
    %37 = vector.multi_reduction <maximumf>, %36, %cst_18 [1] : vector<8x8xf32> to vector<8xf32>
    %38 = vector.shape_cast %37 : vector<8xf32> to vector<8x1xf32>
    %39 = vector.broadcast %38 : vector<8x1xf32> to vector<8x8xf32>
    %40 = arith.subf %36, %39 : vector<8x8xf32>
    %41 = math.exp %40 : vector<8x8xf32>
    %cst_19 = arith.constant dense<0.000000e+00> : vector<8xf32>
    %42 = vector.multi_reduction <add>, %41, %cst_19 [1] : vector<8x8xf32> to vector<8xf32>
    %43 = vector.shape_cast %42 : vector<8xf32> to vector<8x1xf32>
    %44 = tpu.reciprocal %43 {approx = true} : vector<8x1xf32> -> vector<8x1xf32>
    %45 = vector.broadcast %44 : vector<8x1xf32> to vector<8x8xf32>
    %46 = arith.mulf %41, %45 : vector<8x8xf32>
    %cst_20 = arith.constant dense<0.000000e+00> : vector<8x8xf32>
    %47 = tpu.matmul %46, %31, %cst_20 {dimension_numbers = #tpu.dot_dimension_numbers<[1], [0], [0], [1], [0, 0, 1, 1], [], []>} : vector<8x8xf32>, vector<8x8xf32>, vector<8x8xf32> -> vector<8x8xf32>
    %c0_21 = arith.constant 0 : index
    %c8 = arith.constant 8 : index
    %48 = vector.load %arg16[%c0_21, %c8] : memref<8x32xf32, #tpu.memory_space<vmem>>, vector<8x8xf32>
    tpu.vector_store %arg16[%c0_21, %c8], %47 {strides = array<i32>} : memref<8x32xf32, #tpu.memory_space<vmem>>, vector<8x8xf32>,
    %49 = vector.extract_strided_slice %8 {offsets = [0, 16], sizes = [8, 8], strides = [1, 1]} : vector<8x96xf32> to vector<8x8xf32>
    %50 = vector.extract_strided_slice %8 {offsets = [0, 48], sizes = [8, 8], strides = [1, 1]} : vector<8x96xf32> to vector<8x8xf32>
    %51 = vector.extract_strided_slice %8 {offsets = [0, 80], sizes = [8, 8], strides = [1, 1]} : vector<8x96xf32> to vector<8x8xf32>
    %cst_22 = arith.constant dense<0.000000e+00> : vector<8x8xf32>
    %52 = tpu.matmul %49, %50, %cst_22 {dimension_numbers = #tpu.dot_dimension_numbers<[1], [1], [0], [0], [0, 0, 1, 0], [], []>} : vector<8x8xf32>, vector<8x8xf32>, vector<8x8xf32> -> vector<8x8xf32>
    %cst_23 = arith.constant 0.353553385 : f32
    %53 = vector.broadcast %cst_23 : f32 to vector<8x8xf32>
    %54 = arith.mulf %52, %53 : vector<8x8xf32>
    %55 = vector.broadcast %3 : vector<1x8xf32> to vector<8x8xf32>
    %56 = arith.addf %54, %55 : vector<8x8xf32>
    %cst_24 = arith.constant dense<0xFF800000> : vector<8xf32>
    %57 = vector.multi_reduction <maximumf>, %56, %cst_24 [1] : vector<8x8xf32> to vector<8xf32>
    %58 = vector.shape_cast %57 : vector<8xf32> to vector<8x1xf32>
    %59 = vector.broadcast %58 : vector<8x1xf32> to vector<8x8xf32>
    %60 = arith.subf %56, %59 : vector<8x8xf32>
    %61 = math.exp %60 : vector<8x8xf32>
    %cst_25 = arith.constant dense<0.000000e+00> : vector<8xf32>
    %62 = vector.multi_reduction <add>, %61, %cst_25 [1] : vector<8x8xf32> to vector<8xf32>
    %63 = vector.shape_cast %62 : vector<8xf32> to vector<8x1xf32>
    %64 = tpu.reciprocal %63 {approx = true} : vector<8x1xf32> -> vector<8x1xf32>
    %65 = vector.broadcast %64 : vector<8x1xf32> to vector<8x8xf32>
    %66 = arith.mulf %61, %65 : vector<8x8xf32>
    %cst_26 = arith.constant dense<0.000000e+00> : vector<8x8xf32>
    %67 = tpu.matmul %66, %51, %cst_26 {dimension_numbers = #tpu.dot_dimension_numbers<[1], [0], [0], [1], [0, 0, 1, 1], [], []>} : vector<8x8xf32>, vector<8x8xf32>, vector<8x8xf32> -> vector<8x8xf32>
    %c0_27 = arith.constant 0 : index
    %c16 = arith.constant 16 : index
    %68 = vector.load %arg16[%c0_27, %c16] : memref<8x32xf32, #tpu.memory_space<vmem>>, vector<8x8xf32>
    tpu.vector_store %arg16[%c0_27, %c16], %67 {strides = array<i32>} : memref<8x32xf32, #tpu.memory_space<vmem>>, vector<8x8xf32>,
    %69 = vector.extract_strided_slice %8 {offsets = [0, 24], sizes = [8, 8], strides = [1, 1]} : vector<8x96xf32> to vector<8x8xf32>
    %70 = vector.extract_strided_slice %8 {offsets = [0, 56], sizes = [8, 8], strides = [1, 1]} : vector<8x96xf32> to vector<8x8xf32>
    %71 = vector.extract_strided_slice %8 {offsets = [0, 88], sizes = [8, 8], strides = [1, 1]} : vector<8x96xf32> to vector<8x8xf32>
    %cst_28 = arith.constant dense<0.000000e+00> : vector<8x8xf32>
    %72 = tpu.matmul %69, %70, %cst_28 {dimension_numbers = #tpu.dot_dimension_numbers<[1], [1], [0], [0], [0, 0, 1, 0], [], []>} : vector<8x8xf32>, vector<8x8xf32>, vector<8x8xf32> -> vector<8x8xf32>
    %cst_29 = arith.constant 0.353553385 : f32
    %73 = vector.broadcast %cst_29 : f32 to vector<8x8xf32>
    %74 = arith.mulf %72, %73 : vector<8x8xf32>
    %75 = vector.broadcast %3 : vector<1x8xf32> to vector<8x8xf32>
    %76 = arith.addf %74, %75 : vector<8x8xf32>
    %cst_30 = arith.constant dense<0xFF800000> : vector<8xf32>
    %77 = vector.multi_reduction <maximumf>, %76, %cst_30 [1] : vector<8x8xf32> to vector<8xf32>
    %78 = vector.shape_cast %77 : vector<8xf32> to vector<8x1xf32>
    %79 = vector.broadcast %78 : vector<8x1xf32> to vector<8x8xf32>
    %80 = arith.subf %76, %79 : vector<8x8xf32>
    %81 = math.exp %80 : vector<8x8xf32>
    %cst_31 = arith.constant dense<0.000000e+00> : vector<8xf32>
    %82 = vector.multi_reduction <add>, %81, %cst_31 [1] : vector<8x8xf32> to vector<8xf32>
    %83 = vector.shape_cast %82 : vector<8xf32> to vector<8x1xf32>
    %84 = tpu.reciprocal %83 {approx = true} : vector<8x1xf32> -> vector<8x1xf32>
    %85 = vector.broadcast %84 : vector<8x1xf32> to vector<8x8xf32>
    %86 = arith.mulf %81, %85 : vector<8x8xf32>
    %cst_32 = arith.constant dense<0.000000e+00> : vector<8x8xf32>
    %87 = tpu.matmul %86, %71, %cst_32 {dimension_numbers = #tpu.dot_dimension_numbers<[1], [0], [0], [1], [0, 0, 1, 1], [], []>} : vector<8x8xf32>, vector<8x8xf32>, vector<8x8xf32> -> vector<8x8xf32>
    %c0_33 = arith.constant 0 : index
    %c24 = arith.constant 24 : index
    %88 = vector.load %arg16[%c0_33, %c24] : memref<8x32xf32, #tpu.memory_space<vmem>>, vector<8x8xf32>
    tpu.vector_store %arg16[%c0_33, %c24], %87 {strides = array<i32>} : memref<8x32xf32, #tpu.memory_space<vmem>>, vector<8x8xf32>,
    %c0_34 = arith.constant 0 : index
    %c0_35 = arith.constant 0 : index
    %89 = vector.load %arg16[%c0_34, %c0_35] : memref<8x32xf32, #tpu.memory_space<vmem>>, vector<8x32xf32>
    %c0_36 = arith.constant 0 : index
    %c0_37 = arith.constant 0 : index
    %90 = vector.load %arg5[%c0_36, %c0_37] : memref<32x32xf32, #tpu.memory_space<vmem>>, vector<32x32xf32>
    %cst_38 = arith.constant dense<0.000000e+00> : vector<8x32xf32>
    %91 = tpu.matmul %89, %90, %cst_38 {dimension_numbers = #tpu.dot_dimension_numbers<[1], [0], [0], [1], [0, 0, 1, 1], [], []>} : vector<8x32xf32>, vector<32x32xf32>, vector<8x32xf32> -> vector<8x32xf32>
    %c0_39 = arith.constant 0 : index
    %c0_40 = arith.constant 0 : index
    %92 = vector.load %arg6[%c0_39, %c0_40] : memref<1x32xf32, #tpu.memory_space<vmem>>, vector<1x32xf32>
    %93 = vector.broadcast %92 : vector<1x32xf32> to vector<8x32xf32>
    %94 = arith.addf %91, %93 : vector<8x32xf32>
    %95 = arith.addf %1, %94 : vector<8x32xf32>
    %c0_41 = arith.constant 0 : index
    %c0_42 = arith.constant 0 : index
    %96 = vector.load %arg7[%c0_41, %c0_42] : memref<1x32xf32, #tpu.memory_space<vmem>>, vector<1x32xf32>
    %c0_43 = arith.constant 0 : index
    %c0_44 = arith.constant 0 : index
    %97 = vector.load %arg8[%c0_43, %c0_44] : memref<1x32xf32, #tpu.memory_space<vmem>>, vector<1x32xf32>
    %cst_45 = arith.constant dense<0.000000e+00> : vector<8xf32>
    %98 = vector.multi_reduction <add>, %95, %cst_45 [1] : vector<8x32xf32> to vector<8xf32>
    %99 = vector.shape_cast %98 : vector<8xf32> to vector<8x1xf32>
    %cst_46 = arith.constant 3.200000e+01 : f32
    %100 = vector.broadcast %cst_46 : f32 to vector<8x1xf32>
    %101 = arith.divf %99, %100 : vector<8x1xf32>
    %102 = vector.broadcast %101 : vector<8x1xf32> to vector<8x32xf32>
    %103 = arith.subf %95, %102 : vector<8x32xf32>
    %104 = arith.mulf %103, %103 : vector<8x32xf32>
    %cst_47 = arith.constant dense<0.000000e+00> : vector<8xf32>
    %105 = vector.multi_reduction <add>, %104, %cst_47 [1] : vector<8x32xf32> to vector<8xf32>
    %106 = vector.shape_cast %105 : vector<8xf32> to vector<8x1xf32>
    %cst_48 = arith.constant 3.200000e+01 : f32
    %107 = vector.broadcast %cst_48 : f32 to vector<8x1xf32>
    %108 = arith.divf %106, %107 : vector<8x1xf32>
    %cst_49 = arith.constant 9.99999996E-13 : f32
    %109 = vector.broadcast %cst_49 : f32 to vector<8x1xf32>
    %110 = arith.addf %108, %109 : vector<8x1xf32>
    %111 = math.rsqrt %110 : vector<8x1xf32>
    %112 = vector.broadcast %111 : vector<8x1xf32> to vector<8x32xf32>
    %113 = arith.mulf %103, %112 : vector<8x32xf32>
    %114 = vector.broadcast %96 : vector<1x32xf32> to vector<8x32xf32>
    %115 = arith.mulf %113, %114 : vector<8x32xf32>
    %116 = vector.broadcast %97 : vector<1x32xf32> to vector<8x32xf32>
    %117 = arith.addf %115, %116 : vector<8x32xf32>
    %c0_50 = arith.constant 0 : index
    %c0_51 = arith.constant 0 : index
    %118 = vector.load %arg9[%c0_50, %c0_51] : memref<32x64xf32, #tpu.memory_space<vmem>>, vector<32x64xf32>
    %cst_52 = arith.constant dense<0.000000e+00> : vector<8x64xf32>
    %119 = tpu.matmul %117, %118, %cst_52 {dimension_numbers = #tpu.dot_dimension_numbers<[1], [0], [0], [1], [0, 0, 1, 1], [], []>} : vector<8x32xf32>, vector<32x64xf32>, vector<8x64xf32> -> vector<8x64xf32>
    %c0_53 = arith.constant 0 : index
    %c0_54 = arith.constant 0 : index
    %120 = vector.load %arg10[%c0_53, %c0_54] : memref<1x64xf32, #tpu.memory_space<vmem>>, vector<1x64xf32>
    %121 = vector.broadcast %120 : vector<1x64xf32> to vector<8x64xf32>
    %122 = arith.addf %119, %121 : vector<8x64xf32>
    %cst_55 = arith.constant 5.000000e-01 : f32
    %123 = vector.broadcast %cst_55 : f32 to vector<8x64xf32>
    %124 = arith.mulf %123, %122 : vector<8x64xf32>
    %cst_56 = arith.constant 4.471500e-02 : f32
    %125 = vector.broadcast %cst_56 : f32 to vector<8x64xf32>
    %126 = arith.mulf %125, %122 : vector<8x64xf32>
    %127 = arith.mulf %126, %122 : vector<8x64xf32>
    %128 = arith.mulf %127, %122 : vector<8x64xf32>
    %129 = arith.addf %122, %128 : vector<8x64xf32>
    %cst_57 = arith.constant 0.797884583 : f32
    %130 = vector.broadcast %cst_57 : f32 to vector<8x64xf32>
    %131 = arith.mulf %130, %129 : vector<8x64xf32>
    %132 = math.tanh %131 : vector<8x64xf32>
    %cst_58 = arith.constant 1.000000e+00 : f32
    %133 = vector.broadcast %cst_58 : f32 to vector<8x64xf32>
    %134 = arith.addf %133, %132 : vector<8x64xf32>
    %135 = arith.mulf %124, %134 : vector<8x64xf32>
    %c0_59 = arith.constant 0 : index
    %c0_60 = arith.constant 0 : index
    %136 = vector.load %arg11[%c0_59, %c0_60] : memref<64x32xf32, #tpu.memory_space<vmem>>, vector<64x32xf32>
    %cst_61 = arith.constant dense<0.000000e+00> : vector<8x32xf32>
    %137 = tpu.matmul %135, %136, %cst_61 {dimension_numbers = #tpu.dot_dimension_numbers<[1], [0], [0], [1], [0, 0, 1, 1], [], []>} : vector<8x64xf32>, vector<64x32xf32>, vector<8x32xf32> -> vector<8x32xf32>
    %c0_62 = arith.constant 0 : index
    %c0_63 = arith.constant 0 : index
    %138 = vector.load %arg12[%c0_62, %c0_63] : memref<1x32xf32, #tpu.memory_space<vmem>>, vector<1x32xf32>
    %139 = vector.broadcast %138 : vector<1x32xf32> to vector<8x32xf32>
    %140 = arith.addf %137, %139 : vector<8x32xf32>
    %141 = arith.addf %117, %140 : vector<8x32xf32>
    %c0_64 = arith.constant 0 : index
    %c0_65 = arith.constant 0 : index
    %142 = vector.load %arg13[%c0_64, %c0_65] : memref<1x32xf32, #tpu.memory_space<vmem>>, vector<1x32xf32>
    %c0_66 = arith.constant 0 : index
    %c0_67 = arith.constant 0 : index
    %143 = vector.load %arg14[%c0_66, %c0_67] : memref<1x32xf32, #tpu.memory_space<vmem>>, vector<1x32xf32>
    %cst_68 = arith.constant dense<0.000000e+00> : vector<8xf32>
    %144 = vector.multi_reduction <add>, %141, %cst_68 [1] : vector<8x32xf32> to vector<8xf32>
    %145 = vector.shape_cast %144 : vector<8xf32> to vector<8x1xf32>
    %cst_69 = arith.constant 3.200000e+01 : f32
    %146 = vector.broadcast %cst_69 : f32 to vector<8x1xf32>
    %147 = arith.divf %145, %146 : vector<8x1xf32>
    %148 = vector.broadcast %147 : vector<8x1xf32> to vector<8x32xf32>
    %149 = arith.subf %141, %148 : vector<8x32xf32>
    %150 = arith.mulf %149, %149 : vector<8x32xf32>
    %cst_70 = arith.constant dense<0.000000e+00> : vector<8xf32>
    %151 = vector.multi_reduction <add>, %150, %cst_70 [1] : vector<8x32xf32> to vector<8xf32>
    %152 = vector.shape_cast %151 : vector<8xf32> to vector<8x1xf32>
    %cst_71 = arith.constant 3.200000e+01 : f32
    %153 = vector.broadcast %cst_71 : f32 to vector<8x1xf32>
    %154 = arith.divf %152, %153 : vector<8x1xf32>
    %cst_72 = arith.constant 9.99999996E-13 : f32
    %155 = vector.broadcast %cst_72 : f32 to vector<8x1xf32>
    %156 = arith.addf %154, %155 : vector<8x1xf32>
    %157 = math.rsqrt %156 : vector<8x1xf32>
    %158 = vector.broadcast %157 : vector<8x1xf32> to vector<8x32xf32>
    %159 = arith.mulf %149, %158 : vector<8x32xf32>
    %160 = vector.broadcast %142 : vector<1x32xf32> to vector<8x32xf32>
    %161 = arith.mulf %159, %160 : vector<8x32xf32>
    %162 = vector.broadcast %143 : vector<1x32xf32> to vector<8x32xf32>
    %163 = arith.addf %161, %162 : vector<8x32xf32>
    %c0_73 = arith.constant 0 : index
    %c0_74 = arith.constant 0 : index
    %c0_75 = arith.constant 0 : index
    %164 = vector.load %arg15[%c0_73, %c0_74, %c0_75] : memref<1x8x32xf32, #tpu.memory_space<vmem>>, vector<1x8x32xf32>
    %165 = vector.shape_cast %164 : vector<1x8x32xf32> to vector<8x32xf32>
    %166 = vector.shape_cast %163 : vector<8x32xf32> to vector<1x8x32xf32>
    tpu.vector_store %arg15[%c0_73, %c0_74, %c0_75], %166 {strides = array<i32>} : memref<1x8x32xf32, #tpu.memory_space<vmem>>, vector<1x8x32xf32>,
    return
  }
  func.func @transform_0(%arg0: i32) -> (i32, i32, i32) {
    %c0_i32 = arith.constant 0 : i32
    %c0_i32_0 = arith.constant 0 : i32
    %c0_i32_1 = arith.constant 0 : i32
    return %arg0, %c0_i32, %c0_i32_0 : i32, i32, i32
  }
  func.func @transform_1(%arg0: i32) -> (i32, i32, i32) {
    %c0_i32 = arith.constant 0 : i32
    %c0_i32_0 = arith.constant 0 : i32
    %c0_i32_1 = arith.constant 0 : i32
    return %arg0, %c0_i32, %c0_i32_0 : i32, i32, i32
  }
  func.func @transform_2(%arg0: i32) -> (i32, i32) {
    %c0_i32 = arith.constant 0 : i32
    %c0_i32_0 = arith.constant 0 : i32
    %c0_i32_1 = arith.constant 0 : i32
    return %c0_i32, %c0_i32_0 : i32, i32
  }
  func.func @transform_3(%arg0: i32) -> (i32, i32) {
    %c0_i32 = arith.constant 0 : i32
    %c0_i32_0 = arith.constant 0 : i32
    %c0_i32_1 = arith.constant 0 : i32
    return %c0_i32, %c0_i32_0 : i32, i32
  }
  func.func @transform_4(%arg0: i32) -> (i32, i32) {
    %c0_i32 = arith.constant 0 : i32
    %c0_i32_0 = arith.constant 0 : i32
    %c0_i32_1 = arith.constant 0 : i32
    return %c0_i32, %c0_i32_0 : i32, i32
  }
  func.func @transform_5(%arg0: i32) -> (i32, i32) {
    %c0_i32 = arith.constant 0 : i32
    %c0_i32_0 = arith.constant 0 : i32
    %c0_i32_1 = arith.constant 0 : i32
    return %c0_i32, %c0_i32_0 : i32, i32
  }
  func.func @transform_6(%arg0: i32) -> (i32, i32) {
    %c0_i32 = arith.constant 0 : i32
    %c0_i32_0 = arith.constant 0 : i32
    %c0_i32_1 = arith.constant 0 : i32
    return %c0_i32, %c0_i32_0 : i32, i32
  }
  func.func @transform_7(%arg0: i32) -> (i32, i32) {
    %c0_i32 = arith.constant 0 : i32
    %c0_i32_0 = arith.constant 0 : i32
    %c0_i32_1 = arith.constant 0 : i32
    return %c0_i32, %c0_i32_0 : i32, i32
  }
  func.func @transform_8(%arg0: i32) -> (i32, i32) {
    %c0_i32 = arith.constant 0 : i32
    %c0_i32_0 = arith.constant 0 : i32
    %c0_i32_1 = arith.constant 0 : i32
    return %c0_i32, %c0_i32_0 : i32, i32
  }
  func.func @transform_9(%arg0: i32) -> (i32, i32) {
    %c0_i32 = arith.constant 0 : i32
    %c0_i32_0 = arith.constant 0 : i32
    %c0_i32_1 = arith.constant 0 : i32
    return %c0_i32, %c0_i32_0 : i32, i32
  }
  func.func @transform_10(%arg0: i32) -> (i32, i32) {
    %c0_i32 = arith.constant 0 : i32
    %c0_i32_0 = arith.constant 0 : i32
    %c0_i32_1 = arith.constant 0 : i32
    return %c0_i32, %c0_i32_0 : i32, i32
  }
  func.func @transform_11(%arg0: i32) -> (i32, i32) {
    %c0_i32 = arith.constant 0 : i32
    %c0_i32_0 = arith.constant 0 : i32
    %c0_i32_1 = arith.constant 0 : i32
    return %c0_i32, %c0_i32_0 : i32, i32
  }
  func.func @transform_12(%arg0: i32) -> (i32, i32) {
    %c0_i32 = arith.constant 0 : i32
    %c0_i32_0 = arith.constant 0 : i32
    %c0_i32_1 = arith.constant 0 : i32
    return %c0_i32, %c0_i32_0 : i32, i32
  }
  func.func @transform_13(%arg0: i32) -> (i32, i32) {
    %c0_i32 = arith.constant 0 : i32
    %c0_i32_0 = arith.constant 0 : i32
    %c0_i32_1 = arith.constant 0 : i32
    return %c0_i32, %c0_i32_0 : i32, i32
  }
  func.func @transform_14(%arg0: i32) -> (i32, i32, i32) {
    %c0_i32 = arith.constant 0 : i32
    %c0_i32_0 = arith.constant 0 : i32
    %c0_i32_1 = arith.constant 0 : i32
    return %arg0, %c0_i32, %c0_i32_0 : i32, i32, i32
  }
}

</mosaic_0001>

<llo_original>
// kernel: sentiment_classifier_forward.4
$region0: #{sentiment_classifier_forward.4}
  #allocation0 [shape = 'u32[]', space=smem, size = 0x4, offset = 0x4, fixed_abs, tag = 'smem constant byte address 0x4 - core index']
  #allocation1 [shape = 'u32[72,128]{1,0:T(1,128)}', space=vmem, size = 0x9000, scoped, tag = 'internal scratch']
  %s0 = inlined_call_operand.vmem [shape: f32[16,32], index: 0, kind: input, shape index: {}]
  %s1 = inlined_call_operand.vmem [shape: f32[1,32], index: 1, kind: input, shape index: {}]
  %s2 = inlined_call_operand.vmem [shape: f32[1,32], index: 2, kind: input, shape index: {}]
  %s3 = inlined_call_operand.vmem [shape: f32[16,32], index: 3, kind: output, shape index: {}]
  %s4 = sld [smem:[#allocation0]]
  $region22: #{sentiment_classifier_forward.4} parent=0
    _
  %s6 = ssub.s32 1, %s4
  %s7 = scalar_select 0, %s6, %s4
  // Predicated region
  $region2: #{sentiment_classifier_forward.4} parent=0 // pred_check
    _
  $region3: #{sentiment_classifier_forward.4} parent=0 // pred_check_branch
    %9 = sbr.rel (0) target = $region5
  $region4: #{sentiment_classifier_forward.4} parent=0 // pred_region
    _
  $region5: #{sentiment_classifier_forward.4} parent=0 // pred_fallthru
    _
  // Predicated region
  $region6: #{sentiment_classifier_forward.4} parent=0 // pred_check
    _
  $region7: #{sentiment_classifier_forward.4} parent=0 // pred_check_branch
    %11 = sbr.rel (0) target = $region9
  $region8: #{sentiment_classifier_forward.4} parent=0 // pred_region
    _
  $region9: #{sentiment_classifier_forward.4} parent=0 // pred_fallthru
    _
  // Predicated region
  $region10: #{sentiment_classifier_forward.4} parent=0 // pred_check
    _
  $region11: #{sentiment_classifier_forward.4} parent=0 // pred_check_branch
    %13 = sbr.rel (0) target = $region13
  $region12: #{sentiment_classifier_forward.4} parent=0 // pred_region
    _
  $region13: #{sentiment_classifier_forward.4} parent=0 // pred_fallthru
    _
  %v14 = vld [vmem:[%s0] sm:$0xff]
  %v15 = vld [vmem:[%s0 + $0x8] sm:$0xff]
  %v16 = vld [vmem:[%s1] sm:$0x1]
  %v17 = vld [vmem:[%s2] sm:$0x1]
  %vm18 = vcmask 261120
  %v19 = vsel %vm18, %v14, 0.0
  %20 = vadd.xlane.f32.xlu0 %v19
  %v21 = vpop.xlane.xlu0 %20
  %v22 = vsel %vm18, %v15, 0.0
  %23 = vadd.xlane.f32.xlu0 %v22
  %v24 = vpop.xlane.xlu0 %23
  %v25 = vrcp.pop 32.0
  %v26 = vmul.f32 32.0, %v25
  %v27 = vsub.f32 1.0, %v26
  %v28 = vmul.f32 %v25, %v27
  %v29 = vadd.f32 %v25, %v28
  %vm30 = vweird.f32 %v25
  %v31 = vsel %vm30, %v25, %v29
  %v32 = vmul.f32 %v21, %v31
  %v33 = vmul.f32 %v24, %v31
  %v34 = vsub.f32 %v14, %v32
  %v35 = vsub.f32 %v15, %v33
  %v36 = vmul.f32 %v34, %v34
  %v37 = vmul.f32 %v35, %v35
  %v38 = vsel %vm18, %v36, 0.0
  %39 = vadd.xlane.f32.xlu0 %v38
  %v40 = vpop.xlane.xlu0 %39
  %v41 = vsel %vm18, %v37, 0.0
  %42 = vadd.xlane.f32.xlu0 %v41
  %v43 = vpop.xlane.xlu0 %42
  %v44 = vmul.f32 %v40, %v31
  %v45 = vmul.f32 %v43, %v31
  %v46 = vadd.f32 %v44, 1e-12
  %v47 = vadd.f32 %v45, 1e-12
  %v48 = vrsqrt.pop %v46
  %v49 = vmul.f32 %v48, %v46
  %v50 = vmul.f32 %v49, %v48
  %v51 = vmul.f32 0.5, %v50
  %v52 = vsub.f32 1.5, %v51
  %v53 = vmul.f32 %v48, %v52
  %vm54 = vweird.f32 %v46
  %vm55 = vweird.f32 %v48
  %vm56 = vmor %vm54, %vm55
  %v57 = vsel %vm56, %v48, %v53
  %v58 = vrsqrt.pop %v47
  %v59 = vmul.f32 %v58, %v47
  %v60 = vmul.f32 %v59, %v58
  %v61 = vmul.f32 0.5, %v60
  %v62 = vsub.f32 1.5, %v61
  %v63 = vmul.f32 %v58, %v62
  %vm64 = vweird.f32 %v47
  %vm65 = vweird.f32 %v58
  %vm66 = vmor %vm64, %vm65
  %v67 = vsel %vm66, %v58, %v63
  %v68 = vmul.f32 %v34, %v57
  %v69 = vmul.f32 %v35, %v67
  %v71 = vperm.slane %v16, 0
  %v73 = vmul.f32 %v68, %v71
  %v74 = vmul.f32 %v69, %v71
  %v76 = vperm.slane %v17, 0
  %v78 = vadd.f32 %v73, %v76
  %v79 = vadd.f32 %v74, %v76
  %80 = vst.msk [vmem:[%s3] sm:$0xff] %vm18, %v78
  %81 = vst.msk [vmem:[%s3 + $0x8] sm:$0xff] %vm18, %v79
  // Predicated region
  $region14: #{sentiment_classifier_forward.4} parent=0 // pred_check
    _
  $region15: #{sentiment_classifier_forward.4} parent=0 // pred_check_branch
    %83 = sbr.rel (0) target = $region17
  $region16: #{sentiment_classifier_forward.4} parent=0 // pred_region
    _
  $region17: #{sentiment_classifier_forward.4} parent=0 // pred_fallthru
    _
  // Predicated region
  $region18: #{sentiment_classifier_forward.4} parent=0 // pred_check
    _
  $region19: #{sentiment_classifier_forward.4} parent=0 // pred_check_branch
    %85 = sbr.rel (0) target = $region21
  $region20: #{sentiment_classifier_forward.4} parent=0 // pred_region
    _
  $region21: #{sentiment_classifier_forward.4} parent=0 // pred_fallthru
    _

// kernel: sentiment_classifier_forward.7
$region0: #{sentiment_classifier_forward.7}
  #allocation0 [shape = 'u32[]', space=smem, size = 0x4, offset = 0x4, fixed_abs, tag = 'smem constant byte address 0x4 - core index']
  #allocation1 [shape = 'u32[72,128]{1,0:T(1,128)}', space=vmem, size = 0x9000, scoped, tag = 'internal scratch']
  %s0 = inlined_call_operand.vmem [shape: f32[2,32], index: 0, kind: input, shape index: {}]
  %s1 = inlined_call_operand.vmem [shape: f32[32,32], index: 1, kind: input, shape index: {}]
  %s2 = inlined_call_operand.vmem [shape: f32[1,32], index: 2, kind: input, shape index: {}]
  %s3 = inlined_call_operand.vmem [shape: f32[32,128], index: 3, kind: input, shape index: {}]
  %s4 = inlined_call_operand.vmem [shape: f32[1,128], index: 4, kind: input, shape index: {}]
  %s5 = inlined_call_operand.hbm [shape: f32[2,128], index: 5, kind: output, shape index: {}]
  %s6 = sld [smem:[#allocation0]]
  $region30: #{sentiment_classifier_forward.7} parent=0
    _
  %s8 = ssub.s32 1, %s6
  %s9 = scalar_select 0, %s8, %s6
  $region1: #{sentiment_classifier_forward.7} parent=0
    #allocation2 [shape = 'u8[1024]{0}', space=vmem, size = 0x400, scoped, tag = 'output window, operand 0, single buffered']
    #allocation3 [shape = 's32[1]{0}', space=sflag, size = 0x4, scoped, tag = 'scoped memory for sentiment_classifier_forward.7']
    %10 = vsyncpa [#allocation3], 0
    // Predicated region
    $region2: #{sentiment_classifier_forward.7} parent=1 // pred_check
      _
    $region3: #{sentiment_classifier_forward.7} parent=1 // pred_check_branch
      %12 = sbr.rel (0) target = $region5
    $region4: #{sentiment_classifier_forward.7} parent=1 // pred_region
      _
    $region5: #{sentiment_classifier_forward.7} parent=1 // pred_fallthru
      _
    // Predicated region
    $region6: #{sentiment_classifier_forward.7} parent=1 // pred_check
      _
    $region7: #{sentiment_classifier_forward.7} parent=1 // pred_check_branch
      %14 = sbr.rel (0) target = $region9
    $region8: #{sentiment_classifier_forward.7} parent=1 // pred_region
      _
    $region9: #{sentiment_classifier_forward.7} parent=1 // pred_fallthru
      _
    // Predicated region
    $region10: #{sentiment_classifier_forward.7} parent=1 // pred_check
      _
    $region11: #{sentiment_classifier_forward.7} parent=1 // pred_check_branch
      %16 = sbr.rel (0) target = $region13
    $region12: #{sentiment_classifier_forward.7} parent=1 // pred_region
      _
    $region13: #{sentiment_classifier_forward.7} parent=1 // pred_fallthru
      _
    // Predicated region
    $region14: #{sentiment_classifier_forward.7} parent=1 // pred_check
      _
    $region15: #{sentiment_classifier_forward.7} parent=1 // pred_check_branch
      %18 = sbr.rel (0) target = $region17
    $region16: #{sentiment_classifier_forward.7} parent=1 // pred_region
      _
    $region17: #{sentiment_classifier_forward.7} parent=1 // pred_fallthru
      _
    // Predicated region
    $region18: #{sentiment_classifier_forward.7} parent=1 // pred_check
      _
    $region19: #{sentiment_classifier_forward.7} parent=1 // pred_check_branch
      %20 = sbr.rel (0) target = $region21
    $region20: #{sentiment_classifier_forward.7} parent=1 // pred_region
      _
    $region21: #{sentiment_classifier_forward.7} parent=1 // pred_fallthru
      _
    %v21 = vld [vmem:[%s0] sm:$0x3]
    %v22 = vld [vmem:[%s1] sm:$0xff]
    %v23 = vld [vmem:[%s1 + $0x8] sm:$0xff]
    %v24 = vld [vmem:[%s1 + $0x10] sm:$0xff]
    %v25 = vld [vmem:[%s1 + $0x18] sm:$0xff]
    %v26 = vld [vmem:[%s2] sm:$0x1]
    %v28 = vperm.slane %v26, 0
    %vm30 = vcmask 261120
    %v32 = vsel %vm30, %v21, 0
    %34 = vmatpush.msra.mxu0 0.0
    %35 = vmatpush.msra.mxu0 0.0
    %36 = vmatpush.msra.mxu0 0.0
    %37 = vmatpush.msra.mxu0 0.0
    %38 = vmatpush.msra.mxu0 0.0
    %39 = vmatpush.msra.mxu0 0.0
    %40 = vmatpush.msra.mxu0 0.0
    %41 = vmatpush.msra.mxu0 0.0
    %42 = vmatpush.msra.mxu0 0.0
    %43 = vmatpush.msra.mxu0 0.0
    %44 = vmatpush.msra.mxu0 0.0
    %45 = vmatpush.msra.mxu0 0.0
    %46 = vmatpush.msra.mxu0 %v25
    %47 = vmatpush.msra.mxu0 %v24
    %48 = vmatpush.msra.mxu0 %v23
    %49 = vmatpush.msra.mxu0 %v22
    %50 = vmatmul.f32.gmra.mxu0 %v32
    %v51 = vpop.f32.mrf.mxu0
    %v52 = vadd.f32 %v28, %v51
    %53 = vdwg.mxu0
    %v54 = vtanh.pop %v52
    %v55 = vld [vmem:[%s3] sm:$0xff]
    %v56 = vld [vmem:[%s3 + $0x8] sm:$0xff]
    %v57 = vld [vmem:[%s3 + $0x10] sm:$0xff]
    %v58 = vld [vmem:[%s3 + $0x18] sm:$0xff]
    %v59 = vld [vmem:[%s4] sm:$0x1]
    %v61 = vperm.slane %v59, 0
    %v64 = vsel %vm30, %v54, 0
    %66 = vmatpush.msra.mxu0 0.0
    %67 = vmatpush.msra.mxu0 0.0
    %68 = vmatpush.msra.mxu0 0.0
    %69 = vmatpush.msra.mxu0 0.0
    %70 = vmatpush.msra.mxu0 0.0
    %71 = vmatpush.msra.mxu0 0.0
    %72 = vmatpush.msra.mxu0 0.0
    %73 = vmatpush.msra.mxu0 0.0
    %74 = vmatpush.msra.mxu0 0.0
    %75 = vmatpush.msra.mxu0 0.0
    %76 = vmatpush.msra.mxu0 0.0
    %77 = vmatpush.msra.mxu0 0.0
    %78 = vmatpush.msra.mxu0 %v58
    %79 = vmatpush.msra.mxu0 %v57
    %80 = vmatpush.msra.mxu0 %v56
    %81 = vmatpush.msra.mxu0 %v55
    %82 = vmatmul.f32.gmra.mxu0 %v64
    %v83 = vpop.f32.mrf.mxu0
    %v84 = vadd.f32 %v61, %v83
    %85 = vdwg.mxu0
    %86 = vst [vmem:[#allocation2] sm:$0x3] %v84
    // Predicated region
    $region22: #{sentiment_classifier_forward.7} parent=1 // pred_check
      _
    $region23: #{sentiment_classifier_forward.7} parent=1 // pred_check_branch
      %88 = sbr.rel (0) target = $region25
    $region24: #{sentiment_classifier_forward.7} parent=1 // pred_region
      %90 = vsyncadd [#allocation3], 0
      %s92 = sshll.u32 [#allocation2], 4
      %s93 = int_to_ptr.vmem [resolvable:$true] %s92
      %s94 = sshll.u32 %s5, 4
      %s95 = int_to_ptr.hbm [resolvable:$true] %s94
      %97 = dma.vmem_to_hbm [thread:$0]  %s93, 32, %s95, [#allocation3]
    $region25: #{sentiment_classifier_forward.7} parent=1 // pred_fallthru
      _
    // Predicated region
    $region26: #{sentiment_classifier_forward.7} parent=1 // pred_check
      _
    $region27: #{sentiment_classifier_forward.7} parent=1 // pred_check_branch
      %99 = sbr.rel (0) target = $region29
    $region28: #{sentiment_classifier_forward.7} parent=1 // pred_region
      %101 = dma.done [#allocation3], 32
    $region29: #{sentiment_classifier_forward.7} parent=1 // pred_fallthru
      _
    %102 = vsyncpa [#allocation3], 1

// kernel: sentiment_classifier_forward.5
$region0: #{sentiment_classifier_forward.5}
  #allocation0 [shape = 'u32[]', space=smem, size = 0x4, offset = 0x4, fixed_abs, tag = 'smem constant byte address 0x4 - core index']
  #allocation1 [shape = 'u32[72,128]{1,0:T(1,128)}', space=vmem, size = 0x9000, scoped, tag = 'internal scratch']
  #allocation2 [shape = 'f32[8,32]{1,0:T(8,128)}', space=vmem, size = 0x1000, scoped, tag = 'scratch operand']
  %s0 = inlined_call_operand.vmem [shape: f32[2,8,32], index: 0, kind: input, shape index: {}]
  %s1 = inlined_call_operand.vmem [shape: f32[2,1,8], index: 1, kind: input, shape index: {}]
  %s2 = inlined_call_operand.vmem [shape: f32[32,96], index: 2, kind: input, shape index: {}]
  %s3 = inlined_call_operand.vmem [shape: f32[1,96], index: 3, kind: input, shape index: {}]
  %s4 = inlined_call_operand.vmem [shape: f32[32,32], index: 4, kind: input, shape index: {}]
  %s5 = inlined_call_operand.vmem [shape: f32[1,32], index: 5, kind: input, shape index: {}]
  %s6 = inlined_call_operand.vmem [shape: f32[1,32], index: 6, kind: input, shape index: {}]
  %s7 = inlined_call_operand.vmem [shape: f32[1,32], index: 7, kind: input, shape index: {}]
  %s8 = inlined_call_operand.vmem [shape: f32[32,64], index: 8, kind: input, shape index: {}]
  %s9 = inlined_call_operand.vmem [shape: f32[1,64], index: 9, kind: input, shape index: {}]
  %s10 = inlined_call_operand.vmem [shape: f32[64,32], index: 10, kind: input, shape index: {}]
  %s11 = inlined_call_operand.vmem [shape: f32[1,32], index: 11, kind: input, shape index: {}]
  %s12 = inlined_call_operand.vmem [shape: f32[1,32], index: 12, kind: input, shape index: {}]
  %s13 = inlined_call_operand.vmem [shape: f32[1,32], index: 13, kind: input, shape index: {}]
  %s14 = inlined_call_operand.vmem [shape: f32[2,8,32], index: 14, kind: output, shape index: {}]
  %s15 = sld [smem:[#allocation0]]
  $region89: #{sentiment_classifier_forward.5} parent=0
    _
  %s17 = ssub.s32 1, %s15
  %s18 = scalar_select 0, %s17, %s15
  loop: start=0, step=1, limit=4
  $region2: #{sentiment_classifier_forward.5} parent=0 // loop_pre_header
    _
  $region3: #{sentiment_classifier_forward.5} parent=0 // loop_header
    %s20 = sphi 0, %s24
    %p21 = scmp.ge.s32.totalorder %s20, 4
    %s30 = sphi 0, %s32
    %s33 = sphi 0, %s30
    %s34 = sphi 0, %s33
    %s50 = sphi 0, %s34
    %s56 = sphi 0, %s58
    %s59 = sphi 0, %s56
    %s60 = sphi 0, %s59
    %s76 = sphi 0, %s60
    %s80 = sphi 0, %s80
    %s82 = sphi 0, %s80
    %s83 = sphi 0, %s82
    %s97 = sphi 0, %s83
    %s101 = sphi 0, %s101
    %s103 = sphi 0, %s101
    %s104 = sphi 0, %s103
    %s118 = sphi 0, %s104
    %s122 = sphi 0, %s122
    %s124 = sphi 0, %s122
    %s125 = sphi 0, %s124
    %s139 = sphi 0, %s125
    %s143 = sphi 0, %s143
    %s145 = sphi 0, %s143
    %s146 = sphi 0, %s145
    %s160 = sphi 0, %s146
    %s164 = sphi 0, %s164
    %s166 = sphi 0, %s164
    %s167 = sphi 0, %s166
    %s181 = sphi 0, %s167
    %s185 = sphi 0, %s185
    %s187 = sphi 0, %s185
    %s188 = sphi 0, %s187
    %s202 = sphi 0, %s188
    %s206 = sphi 0, %s206
    %s208 = sphi 0, %s206
    %s209 = sphi 0, %s208
    %s223 = sphi 0, %s209
    %s227 = sphi 0, %s227
    %s229 = sphi 0, %s227
    %s230 = sphi 0, %s229
    %s244 = sphi 0, %s230
    %s248 = sphi 0, %s248
    %s250 = sphi 0, %s248
    %s251 = sphi 0, %s250
    %s265 = sphi 0, %s251
    %s269 = sphi 0, %s269
    %s271 = sphi 0, %s269
    %s272 = sphi 0, %s271
    %s286 = sphi 0, %s272
    %s290 = sphi 0, %s290
    %s292 = sphi 0, %s290
    %s293 = sphi 0, %s292
    %s307 = sphi 0, %s293
    %s311 = sphi 0, %s311
    %s313 = sphi 0, %s311
    %s314 = sphi 0, %s313
    %s328 = sphi 0, %s314
    %s334 = sphi 0, %s336
    %s337 = sphi 0, %s334
    %s338 = sphi 0, %s337
    %s354 = sphi 0, %s338
  $region4: #{sentiment_classifier_forward.5} parent=0 // loop_header_branch
    %23 = sbr.rel (%p21) target = $region8
  $region5: #{sentiment_classifier_forward.5} parent=0 // loop_body
    %s25 = ssub.s32 %s20, 1
    %s26 = ssub.s32 %s20, 2
    %s27 = sadd.s32 %s20, 1
    %s28 = ssub.s32 %s20, %s27
    %p29 = scmp.eq.s32.totalorder %s28, 0
    %s31 = sadd.s32 %s30, 1
    %s32 = scalar_select %p29, %s30, %s31
    %p35 = pneg %p29
    %p36 = scmp.eq.s32.totalorder %s20, 1
    %p37 = por %p35, %p36
    %p38 = scmp.ne.s32.totalorder %s30, %s33
    %p39 = scmp.eq.s32.totalorder %s20, 0
    %p40 = por %p38, %p39
    %p41 = scmp.ne.s32.totalorder %s30, %s33
    %p42 = scmp.eq.s32.totalorder %s25, 1
    %p43 = por %p41, %p42
    %p44 = scmp.ne.s32.totalorder %s33, %s34
    %p45 = scmp.eq.s32.totalorder %s25, 0
    %p46 = por %p44, %p45
    %p47 = scmp.ne.s32.totalorder %s33, %s34
    %p48 = scmp.eq.s32.totalorder %s26, 1
    %p49 = por %p47, %p48
    %p51 = scmp.ne.s32.totalorder %s34, %s50
    %p52 = scmp.eq.s32.totalorder %s26, 0
    %p53 = por %p51, %p52
    %s54 = ssub.s32 %s20, %s27
    %p55 = scmp.eq.s32.totalorder %s54, 0
    %s57 = sadd.s32 %s56, 1
    %s58 = scalar_select %p55, %s56, %s57
    %p61 = pneg %p55
    %p62 = scmp.eq.s32.totalorder %s20, 1
    %p63 = por %p61, %p62
    %p64 = scmp.ne.s32.totalorder %s56, %s59
    %p65 = scmp.eq.s32.totalorder %s20, 0
    %p66 = por %p64, %p65
    %p67 = scmp.ne.s32.totalorder %s56, %s59
    %p68 = scmp.eq.s32.totalorder %s25, 1
    %p69 = por %p67, %p68
    %p70 = scmp.ne.s32.totalorder %s59, %s60
    %p71 = scmp.eq.s32.totalorder %s25, 0
    %p72 = por %p70, %p71
    %p73 = scmp.ne.s32.totalorder %s59, %s60
    %p74 = scmp.eq.s32.totalorder %s26, 1
    %p75 = por %p73, %p74
    %p77 = scmp.ne.s32.totalorder %s60, %s76
    %p78 = scmp.eq.s32.totalorder %s26, 0
    %p79 = por %p77, %p78
    %s81 = sadd.s32 %s80, 1
    %p84 = scmp.eq.s32.totalorder %s20, 1
    %p85 = scmp.ne.s32.totalorder %s80, %s82
    %p86 = scmp.eq.s32.totalorder %s20, 0
    %p87 = por %p85, %p86
    %p88 = scmp.ne.s32.totalorder %s80, %s82
    %p89 = scmp.eq.s32.totalorder %s25, 1
    %p90 = por %p88, %p89
    %p91 = scmp.ne.s32.totalorder %s82, %s83
    %p92 = scmp.eq.s32.totalorder %s25, 0
    %p93 = por %p91, %p92
    %p94 = scmp.ne.s32.totalorder %s82, %s83
    %p95 = scmp.eq.s32.totalorder %s26, 1
    %p96 = por %p94, %p95
    %p98 = scmp.ne.s32.totalorder %s83, %s97
    %p99 = scmp.eq.s32.totalorder %s26, 0
    %p100 = por %p98, %p99
    %s102 = sadd.s32 %s101, 1
    %p105 = scmp.eq.s32.totalorder %s20, 1
    %p106 = scmp.ne.s32.totalorder %s101, %s103
    %p107 = scmp.eq.s32.totalorder %s20, 0
    %p108 = por %p106, %p107
    %p109 = scmp.ne.s32.totalorder %s101, %s103
    %p110 = scmp.eq.s32.totalorder %s25, 1
    %p111 = por %p109, %p110
    %p112 = scmp.ne.s32.totalorder %s103, %s104
    %p113 = scmp.eq.s32.totalorder %s25, 0
    %p114 = por %p112, %p113
    %p115 = scmp.ne.s32.totalorder %s103, %s104
    %p116 = scmp.eq.s32.totalorder %s26, 1
    %p117 = por %p115, %p116
    %p119 = scmp.ne.s32.totalorder %s104, %s118
    %p120 = scmp.eq.s32.totalorder %s26, 0
    %p121 = por %p119, %p120
    %s123 = sadd.s32 %s122, 1
    %p126 = scmp.eq.s32.totalorder %s20, 1
    %p127 = scmp.ne.s32.totalorder %s122, %s124
    %p128 = scmp.eq.s32.totalorder %s20, 0
    %p129 = por %p127, %p128
    %p130 = scmp.ne.s32.totalorder %s122, %s124
    %p131 = scmp.eq.s32.totalorder %s25, 1
    %p132 = por %p130, %p131
    %p133 = scmp.ne.s32.totalorder %s124, %s125
    %p134 = scmp.eq.s32.totalorder %s25, 0
    %p135 = por %p133, %p134
    %p136 = scmp.ne.s32.totalorder %s124, %s125
    %p137 = scmp.eq.s32.totalorder %s26, 1
    %p138 = por %p136, %p137
    %p140 = scmp.ne.s32.totalorder %s125, %s139
    %p141 = scmp.eq.s32.totalorder %s26, 0
    %p142 = por %p140, %p141
    %s144 = sadd.s32 %s143, 1
    %p147 = scmp.eq.s32.totalorder %s20, 1
    %p148 = scmp.ne.s32.totalorder %s143, %s145
    %p149 = scmp.eq.s32.totalorder %s20, 0
    %p150 = por %p148, %p149
    %p151 = scmp.ne.s32.totalorder %s143, %s145
    %p152 = scmp.eq.s32.totalorder %s25, 1
    %p153 = por %p151, %p152
    %p154 = scmp.ne.s32.totalorder %s145, %s146
    %p155 = scmp.eq.s32.totalorder %s25, 0
    %p156 = por %p154, %p155
    %p157 = scmp.ne.s32.totalorder %s145, %s146
    %p158 = scmp.eq.s32.totalorder %s26, 1
    %p159 = por %p157, %p158
    %p161 = scmp.ne.s32.totalorder %s146, %s160
    %p162 = scmp.eq.s32.totalorder %s26, 0
    %p163 = por %p161, %p162
    %s165 = sadd.s32 %s164, 1
    %p168 = scmp.eq.s32.totalorder %s20, 1
    %p169 = scmp.ne.s32.totalorder %s164, %s166
    %p170 = scmp.eq.s32.totalorder %s20, 0
    %p171 = por %p169, %p170
    %p172 = scmp.ne.s32.totalorder %s164, %s166
    %p173 = scmp.eq.s32.totalorder %s25, 1
    %p174 = por %p172, %p173
    %p175 = scmp.ne.s32.totalorder %s166, %s167
    %p176 = scmp.eq.s32.totalorder %s25, 0
    %p177 = por %p175, %p176
    %p178 = scmp.ne.s32.totalorder %s166, %s167
    %p179 = scmp.eq.s32.totalorder %s26, 1
    %p180 = por %p178, %p179
    %p182 = scmp.ne.s32.totalorder %s167, %s181
    %p183 = scmp.eq.s32.totalorder %s26, 0
    %p184 = por %p182, %p183
    %s186 = sadd.s32 %s185, 1
    %p189 = scmp.eq.s32.totalorder %s20, 1
    %p190 = scmp.ne.s32.totalorder %s185, %s187
    %p191 = scmp.eq.s32.totalorder %s20, 0
    %p192 = por %p190, %p191
    %p193 = scmp.ne.s32.totalorder %s185, %s187
    %p194 = scmp.eq.s32.totalorder %s25, 1
    %p195 = por %p193, %p194
    %p196 = scmp.ne.s32.totalorder %s187, %s188
    %p197 = scmp.eq.s32.totalorder %s25, 0
    %p198 = por %p196, %p197
    %p199 = scmp.ne.s32.totalorder %s187, %s188
    %p200 = scmp.eq.s32.totalorder %s26, 1
    %p201 = por %p199, %p200
    %p203 = scmp.ne.s32.totalorder %s188, %s202
    %p204 = scmp.eq.s32.totalorder %s26, 0
    %p205 = por %p203, %p204
    %s207 = sadd.s32 %s206, 1
    %p210 = scmp.eq.s32.totalorder %s20, 1
    %p211 = scmp.ne.s32.totalorder %s206, %s208
    %p212 = scmp.eq.s32.totalorder %s20, 0
    %p213 = por %p211, %p212
    %p214 = scmp.ne.s32.totalorder %s206, %s208
    %p215 = scmp.eq.s32.totalorder %s25, 1
    %p216 = por %p214, %p215
    %p217 = scmp.ne.s32.totalorder %s208, %s209
    %p218 = scmp.eq.s32.totalorder %s25, 0
    %p219 = por %p217, %p218
    %p220 = scmp.ne.s32.totalorder %s208, %s209
    %p221 = scmp.eq.s32.totalorder %s26, 1
    %p222 = por %p220, %p221
    %p224 = scmp.ne.s32.totalorder %s209, %s223
    %p225 = scmp.eq.s32.totalorder %s26, 0
    %p226 = por %p224, %p225
    %s228 = sadd.s32 %s227, 1
    %p231 = scmp.eq.s32.totalorder %s20, 1
    %p232 = scmp.ne.s32.totalorder %s227, %s229
    %p233 = scmp.eq.s32.totalorder %s20, 0
    %p234 = por %p232, %p233
    %p235 = scmp.ne.s32.totalorder %s227, %s229
    %p236 = scmp.eq.s32.totalorder %s25, 1
    %p237 = por %p235, %p236
    %p238 = scmp.ne.s32.totalorder %s229, %s230
    %p239 = scmp.eq.s32.totalorder %s25, 0
    %p240 = por %p238, %p239
    %p241 = scmp.ne.s32.totalorder %s229, %s230
    %p242 = scmp.eq.s32.totalorder %s26, 1
    %p243 = por %p241, %p242
    %p245 = scmp.ne.s32.totalorder %s230, %s244
    %p246 = scmp.eq.s32.totalorder %s26, 0
    %p247 = por %p245, %p246
    %s249 = sadd.s32 %s248, 1
    %p252 = scmp.eq.s32.totalorder %s20, 1
    %p253 = scmp.ne.s32.totalorder %s248, %s250
    %p254 = scmp.eq.s32.totalorder %s20, 0
    %p255 = por %p253, %p254
    %p256 = scmp.ne.s32.totalorder %s248, %s250
    %p257 = scmp.eq.s32.totalorder %s25, 1
    %p258 = por %p256, %p257
    %p259 = scmp.ne.s32.totalorder %s250, %s251
    %p260 = scmp.eq.s32.totalorder %s25, 0
    %p261 = por %p259, %p260
    %p262 = scmp.ne.s32.totalorder %s250, %s251
    %p263 = scmp.eq.s32.totalorder %s26, 1
    %p264 = por %p262, %p263
    %p266 = scmp.ne.s32.totalorder %s251, %s265
    %p267 = scmp.eq.s32.totalorder %s26, 0
    %p268 = por %p266, %p267
    %s270 = sadd.s32 %s269, 1
    %p273 = scmp.eq.s32.totalorder %s20, 1
    %p274 = scmp.ne.s32.totalorder %s269, %s271
    %p275 = scmp.eq.s32.totalorder %s20, 0
    %p276 = por %p274, %p275
    %p277 = scmp.ne.s32.totalorder %s269, %s271
    %p278 = scmp.eq.s32.totalorder %s25, 1
    %p279 = por %p277, %p278
    %p280 = scmp.ne.s32.totalorder %s271, %s272
    %p281 = scmp.eq.s32.totalorder %s25, 0
    %p282 = por %p280, %p281
    %p283 = scmp.ne.s32.totalorder %s271, %s272
    %p284 = scmp.eq.s32.totalorder %s26, 1
    %p285 = por %p283, %p284
    %p287 = scmp.ne.s32.totalorder %s272, %s286
    %p288 = scmp.eq.s32.totalorder %s26, 0
    %p289 = por %p287, %p288
    %s291 = sadd.s32 %s290, 1
    %p294 = scmp.eq.s32.totalorder %s20, 1
    %p295 = scmp.ne.s32.totalorder %s290, %s292
    %p296 = scmp.eq.s32.totalorder %s20, 0
    %p297 = por %p295, %p296
    %p298 = scmp.ne.s32.totalorder %s290, %s292
    %p299 = scmp.eq.s32.totalorder %s25, 1
    %p300 = por %p298, %p299
    %p301 = scmp.ne.s32.totalorder %s292, %s293
    %p302 = scmp.eq.s32.totalorder %s25, 0
    %p303 = por %p301, %p302
    %p304 = scmp.ne.s32.totalorder %s292, %s293
    %p305 = scmp.eq.s32.totalorder %s26, 1
    %p306 = por %p304, %p305
    %p308 = scmp.ne.s32.totalorder %s293, %s307
    %p309 = scmp.eq.s32.totalorder %s26, 0
    %p310 = por %p308, %p309
    %s312 = sadd.s32 %s311, 1
    %p315 = scmp.eq.s32.totalorder %s20, 1
    %p316 = scmp.ne.s32.totalorder %s311, %s313
    %p317 = scmp.eq.s32.totalorder %s20, 0
    %p318 = por %p316, %p317
    %p319 = scmp.ne.s32.totalorder %s311, %s313
    %p320 = scmp.eq.s32.totalorder %s25, 1
    %p321 = por %p319, %p320
    %p322 = scmp.ne.s32.totalorder %s313, %s314
    %p323 = scmp.eq.s32.totalorder %s25, 0
    %p324 = por %p322, %p323
    %p325 = scmp.ne.s32.totalorder %s313, %s314
    %p326 = scmp.eq.s32.totalorder %s26, 1
    %p327 = por %p325, %p326
    %p329 = scmp.ne.s32.totalorder %s314, %s328
    %p330 = scmp.eq.s32.totalorder %s26, 0
    %p331 = por %p329, %p330
    %s332 = ssub.s32 %s20, %s27
    %p333 = scmp.eq.s32.totalorder %s332, 0
    %s335 = sadd.s32 %s334, 1
    %s336 = scalar_select %p333, %s334, %s335
    %p339 = pneg %p333
    %p340 = scmp.eq.s32.totalorder %s20, 1
    %p341 = por %p339, %p340
    %p342 = scmp.ne.s32.totalorder %s334, %s337
    %p343 = scmp.eq.s32.totalorder %s20, 0
    %p344 = por %p342, %p343
    %p345 = scmp.ne.s32.totalorder %s334, %s337
    %p346 = scmp.eq.s32.totalorder %s25, 1
    %p347 = por %p345, %p346
    %p348 = scmp.ne.s32.totalorder %s337, %s338
    %p349 = scmp.eq.s32.totalorder %s25, 0
    %p350 = por %p348, %p349
    %p351 = scmp.ne.s32.totalorder %s337, %s338
    %p352 = scmp.eq.s32.totalorder %s26, 1
    %p353 = por %p351, %p352
    %p355 = scmp.ne.s32.totalorder %s338, %s354
    %p356 = scmp.eq.s32.totalorder %s26, 0
    %p357 = por %p355, %p356
    %p358 = scmp.le.s32.totalorder 1, %s20
    %p359 = scmp.lt.s32.totalorder %s20, 3
    %p360 = pnand %p358, %p359
    %p361 = pneg %p360
    // Predicated region
    $region9: #{sentiment_classifier_forward.5} parent=5 // pred_check
      _
    $region10: #{sentiment_classifier_forward.5} parent=5 // pred_check_branch
      %363 = sbr.rel (%p360) target = $region12
    $region11: #{sentiment_classifier_forward.5} parent=5 // pred_region
      %s364 = ssub.s32 %s20, 1
      // Predicated region
      $region13: #{sentiment_classifier_forward.5} parent=11 // pred_check
        %p365 = pneg %p93
      $region14: #{sentiment_classifier_forward.5} parent=11 // pred_check_branch
        %367 = sbr.rel (%p365) target = $region16
      $region15: #{sentiment_classifier_forward.5} parent=11 // pred_region
        _
      $region16: #{sentiment_classifier_forward.5} parent=11 // pred_fallthru
        _
      // Predicated region
      $region17: #{sentiment_classifier_forward.5} parent=11 // pred_check
        %p368 = pneg %p114
      $region18: #{sentiment_classifier_forward.5} parent=11 // pred_check_branch
        %370 = sbr.rel (%p368) target = $region20
      $region19: #{sentiment_classifier_forward.5} parent=11 // pred_region
        _
      $region20: #{sentiment_classifier_forward.5} parent=11 // pred_fallthru
        _
      // Predicated region
      $region21: #{sentiment_classifier_forward.5} parent=11 // pred_check
        %p371 = pneg %p135
      $region22: #{sentiment_classifier_forward.5} parent=11 // pred_check_branch
        %373 = sbr.rel (%p371) target = $region24
      $region23: #{sentiment_classifier_forward.5} parent=11 // pred_region
        _
      $region24: #{sentiment_classifier_forward.5} parent=11 // pred_fallthru
        _
      // Predicated region
      $region25: #{sentiment_classifier_forward.5} parent=11 // pred_check
        %p374 = pneg %p156
      $region26: #{sentiment_classifier_forward.5} parent=11 // pred_check_branch
        %376 = sbr.rel (%p374) target = $region28
      $region27: #{sentiment_classifier_forward.5} parent=11 // pred_region
        _
      $region28: #{sentiment_classifier_forward.5} parent=11 // pred_fallthru
        _
      // Predicated region
      $region29: #{sentiment_classifier_forward.5} parent=11 // pred_check
        %p377 = pneg %p177
      $region30: #{sentiment_classifier_forward.5} parent=11 // pred_check_branch
        %379 = sbr.rel (%p377) target = $region32
      $region31: #{sentiment_classifier_forward.5} parent=11 // pred_region
        _
      $region32: #{sentiment_classifier_forward.5} parent=11 // pred_fallthru
        _
      // Predicated region
      $region33: #{sentiment_classifier_forward.5} parent=11 // pred_check
        %p380 = pneg %p198
      $region34: #{sentiment_classifier_forward.5} parent=11 // pred_check_branch
        %382 = sbr.rel (%p380) target = $region36
      $region35: #{sentiment_classifier_forward.5} parent=11 // pred_region
        _
      $region36: #{sentiment_classifier_forward.5} parent=11 // pred_fallthru
        _
      // Predicated region
      $region37: #{sentiment_classifier_forward.5} parent=11 // pred_check
        %p383 = pneg %p219
      $region38: #{sentiment_classifier_forward.5} parent=11 // pred_check_branch
        %385 = sbr.rel (%p383) target = $region40
      $region39: #{sentiment_classifier_forward.5} parent=11 // pred_region
        _
      $region40: #{sentiment_classifier_forward.5} parent=11 // pred_fallthru
        _
      // Predicated region
      $region41: #{sentiment_classifier_forward.5} parent=11 // pred_check
        %p386 = pneg %p240
      $region42: #{sentiment_classifier_forward.5} parent=11 // pred_check_branch
        %388 = sbr.rel (%p386) target = $region44
      $region43: #{sentiment_classifier_forward.5} parent=11 // pred_region
        _
      $region44: #{sentiment_classifier_forward.5} parent=11 // pred_fallthru
        _
      // Predicated region
      $region45: #{sentiment_classifier_forward.5} parent=11 // pred_check
        %p389 = pneg %p261
      $region46: #{sentiment_classifier_forward.5} parent=11 // pred_check_branch
        %391 = sbr.rel (%p389) target = $region48
      $region47: #{sentiment_classifier_forward.5} parent=11 // pred_region
        _
      $region48: #{sentiment_classifier_forward.5} parent=11 // pred_fallthru
        _
      // Predicated region
      $region49: #{sentiment_classifier_forward.5} parent=11 // pred_check
        %p392 = pneg %p282
      $region50: #{sentiment_classifier_forward.5} parent=11 // pred_check_branch
        %394 = sbr.rel (%p392) target = $region52
      $region51: #{sentiment_classifier_forward.5} parent=11 // pred_region
        _
      $region52: #{sentiment_classifier_forward.5} parent=11 // pred_fallthru
        _
      // Predicated region
      $region53: #{sentiment_classifier_forward.5} parent=11 // pred_check
        %p395 = pneg %p303
      $region54: #{sentiment_classifier_forward.5} parent=11 // pred_check_branch
        %397 = sbr.rel (%p395) target = $region56
      $region55: #{sentiment_classifier_forward.5} parent=11 // pred_region
        _
      $region56: #{sentiment_classifier_forward.5} parent=11 // pred_fallthru
        _
      // Predicated region
      $region57: #{sentiment_classifier_forward.5} parent=11 // pred_check
        %p398 = pneg %p324
      $region58: #{sentiment_classifier_forward.5} parent=11 // pred_check_branch
        %400 = sbr.rel (%p398) target = $region60
      $region59: #{sentiment_classifier_forward.5} parent=11 // pred_region
        _
      $region60: #{sentiment_classifier_forward.5} parent=11 // pred_fallthru
        _
    $region12: #{sentiment_classifier_forward.5} parent=5 // pred_fallthru
      _
    %p401 = scmp.lt.s32.totalorder %s20, 2
    // Predicated region
    $region61: #{sentiment_classifier_forward.5} parent=5 // pred_check
      %p402 = pneg %p401
    $region62: #{sentiment_classifier_forward.5} parent=5 // pred_check_branch
      %404 = sbr.rel (%p402) target = $region64
    $region63: #{sentiment_classifier_forward.5} parent=5 // pred_region
      // Predicated region
      $region65: #{sentiment_classifier_forward.5} parent=63 // pred_check
        %p405 = pneg %p40
      $region66: #{sentiment_classifier_forward.5} parent=63 // pred_check_branch
        %407 = sbr.rel (%p405) target = $region68
      $region67: #{sentiment_classifier_forward.5} parent=63 // pred_region
        %p408 = scmp.lt.s32.totalorder %s20, 1
        %s409 = scalar_select %p408, %s20, 1
        %s410 = smul.addr %s409, 8
        %s411 = scalar_lea.vmem %s0, %s410
      $region68: #{sentiment_classifier_forward.5} parent=63 // pred_fallthru
        _
      // Predicated region
      $region69: #{sentiment_classifier_forward.5} parent=63 // pred_check
        %p412 = pneg %p66
      $region70: #{sentiment_classifier_forward.5} parent=63 // pred_check_branch
        %414 = sbr.rel (%p412) target = $region72
      $region71: #{sentiment_classifier_forward.5} parent=63 // pred_region
        %p415 = scmp.lt.s32.totalorder %s20, 1
        %s416 = scalar_select %p415, %s20, 1
        %s417 = scalar_lea.vmem %s1, %s416
      $region72: #{sentiment_classifier_forward.5} parent=63 // pred_fallthru
        _
    $region64: #{sentiment_classifier_forward.5} parent=5 // pred_fallthru
      _
    %p418 = scmp.le.s32.totalorder 1, %s20
    %p419 = scmp.lt.s32.totalorder %s20, 3
    %p420 = pnand %p418, %p419
    %p421 = pneg %p420
    // Predicated region
    $region73: #{sentiment_classifier_forward.5} parent=5 // pred_check
      _
    $region74: #{sentiment_classifier_forward.5} parent=5 // pred_check_branch
      %423 = sbr.rel (%p420) target = $region76
    $region75: #{sentiment_classifier_forward.5} parent=5 // pred_region
      %s424 = ssub.s32 %s20, 1
      %p425 = scmp.lt.s32.totalorder %s25, 1
      %s426 = scalar_select %p425, %s25, 1
      %s427 = smul.addr %s426, 8
      %s428 = scalar_lea.vmem %s0, %s427
      %p429 = pneg %p46
      %p430 = pneg %p43
      %p431 = scmp.lt.s32.totalorder %s25, 1
      %s432 = scalar_select %p431, %s25, 1
      %s433 = scalar_lea.vmem %s1, %s432
      %p434 = pneg %p72
      %p435 = pneg %p69
      %p436 = pneg %p93
      %p437 = pneg %p90
      %p438 = pneg %p114
      %p439 = pneg %p111
      %p440 = pneg %p135
      %p441 = pneg %p132
      %p442 = pneg %p156
      %p443 = pneg %p153
      %p444 = pneg %p177
      %p445 = pneg %p174
      %p446 = pneg %p198
      %p447 = pneg %p195
      %p448 = pneg %p219
      %p449 = pneg %p216
      %p450 = pneg %p240
      %p451 = pneg %p237
      %p452 = pneg %p261
      %p453 = pneg %p258
      %p454 = pneg %p282
      %p455 = pneg %p279
      %p456 = pneg %p303
      %p457 = pneg %p300
      %p458 = pneg %p324
      %p459 = pneg %p321
      %p460 = pneg %p350
      %p461 = pneg %p347
      %p462 = scmp.lt.s32.totalorder %s25, 1
      %s463 = scalar_select %p462, %s25, 1
      %s464 = smul.addr %s463, 8
      %s465 = scalar_lea.vmem %s14, %s464
      %p466 = scmp.lt.s32.totalorder %s25, 1
      %s467 = scalar_select %p466, %s25, 1
      %s468 = smul.addr %s467, 8
      %s469 = scalar_lea.vmem %s0, %s468
      %p470 = scmp.lt.s32.totalorder %s25, 1
      %s471 = scalar_select %p470, %s25, 1
      %s472 = scalar_lea.vmem %s1, %s471
      %p473 = scmp.lt.s32.totalorder %s25, 1
      %s474 = scalar_select %p473, %s25, 1
      %s475 = smul.addr %s474, 8
      %s476 = scalar_lea.vmem %s14, %s475
      %v477 = vld [vmem:[%s469] sm:$0xff]
      %v478 = vld [vmem:[%s472] sm:$0x1]
      %v479 = vld [vmem:[%s2] sm:$0xff]
      %v480 = vld [vmem:[%s2 + $0x8] sm:$0xff]
      %v481 = vld [vmem:[%s2 + $0x10] sm:$0xff]
      %v482 = vld [vmem:[%s2 + $0x18] sm:$0xff]
      %v483 = vld [vmem:[%s3] sm:$0x1]
      %v485 = vperm.slane %v483, 0
      %vm487 = vcmask 261120
      %v489 = vsel %vm487, %v477, 0
      %491 = vmatpush.msra.mxu0 0.0
      %492 = vmatpush.msra.mxu0 0.0
      %493 = vmatpush.msra.mxu0 0.0
      %494 = vmatpush.msra.mxu0 0.0
      %495 = vmatpush.msra.mxu0 0.0
      %496 = vmatpush.msra.mxu0 0.0
      %497 = vmatpush.msra.mxu0 0.0
      %498 = vmatpush.msra.mxu0 0.0
      %499 = vmatpush.msra.mxu0 0.0
      %500 = vmatpush.msra.mxu0 0.0
      %501 = vmatpush.msra.mxu0 0.0
      %502 = vmatpush.msra.mxu0 0.0
      %503 = vmatpush.msra.mxu0 %v482
      %504 = vmatpush.msra.mxu0 %v481
      %505 = vmatpush.msra.mxu0 %v480
      %506 = vmatpush.msra.mxu0 %v479
      %507 = vmatmul.f32.gmra.mxu0 %v489
      %v508 = vpop.f32.mrf.mxu0
      %v509 = vadd.f32 %v485, %v508
      %510 = vdwg.mxu0
      %512 = vrot.lane.b32.xlu0 %v509, 96
      %v513 = vpop.permute.xlu0 %512
      %vm514 = vcmask 64512
      %v515 = vsel %vm514, %v509, 0
      %v517 = vsel %vm514, %v513, 0
      %519 = vmatpush.xpose.msra.mxu0 0.0
      %520 = vmatpush.xpose.msra.mxu0 0.0
      %521 = vmatpush.xpose.msra.mxu0 0.0
      %522 = vmatpush.xpose.msra.mxu0 0.0
      %523 = vmatpush.xpose.msra.mxu0 0.0
      %524 = vmatpush.xpose.msra.mxu0 0.0
      %525 = vmatpush.xpose.msra.mxu0 0.0
      %526 = vmatpush.xpose.msra.mxu0 0.0
      %527 = vmatpush.xpose.msra.mxu0 0.0
      %528 = vmatpush.xpose.msra.mxu0 0.0
      %529 = vmatpush.xpose.msra.mxu0 0.0
      %530 = vmatpush.xpose.msra.mxu0 0.0
      %531 = vmatpush.xpose.msra.mxu0 0.0
      %532 = vmatpush.xpose.msra.mxu0 0.0
      %533 = vmatpush.xpose.msra.mxu0 0.0
      %534 = vmatpush.xpose.msra.mxu0 %v517
      %535 = vmatmul.f32.gmra.mxu0 %v515
      %v536 = vpop.f32.mrf.mxu0
      %v537 = vadd.f32 0.0, %v536
      %538 = vdwg.mxu0
      %v539 = vmul.f32 %v537, 0.35355338
      %v541 = vperm.slane %v478, 0
      %v543 = vadd.f32 %v539, %v541
      %v544 = vsel %vm514, %v543, -inf
      %545 = vmax.xlane.f32.xlu0 %v544
      %v546 = vpop.xlane.xlu0 %545
      %v547 = vsub.f32 %v543, %v546
      %v548 = vmul.f32 %v547, 1.442695
      %v549 = vpow.pop %v548
      %v550 = vsel %vm514, %v549, 0.0
      %551 = vadd.xlane.f32.xlu0 %v550
      %v552 = vpop.xlane.xlu0 %551
      %v553 = vrcp.pop %v552
      %v554 = vmul.f32 %v549, %v553
      %555 = vrot.lane.b32.xlu0 %v509, 64
      %v556 = vpop.permute.xlu0 %555
      %v559 = vsel %vm514, %v554, 0
      %561 = vmatpush.msra.mxu0 0.0
      %562 = vmatpush.msra.mxu0 0.0
      %563 = vmatpush.msra.mxu0 0.0
      %564 = vmatpush.msra.mxu0 0.0
      %565 = vmatpush.msra.mxu0 0.0
      %566 = vmatpush.msra.mxu0 0.0
      %567 = vmatpush.msra.mxu0 0.0
      %568 = vmatpush.msra.mxu0 0.0
      %569 = vmatpush.msra.mxu0 0.0
      %570 = vmatpush.msra.mxu0 0.0
      %571 = vmatpush.msra.mxu0 0.0
      %572 = vmatpush.msra.mxu0 0.0
      %573 = vmatpush.msra.mxu0 0.0
      %574 = vmatpush.msra.mxu0 0.0
      %575 = vmatpush.msra.mxu0 0.0
      %576 = vmatpush.msra.mxu0 %v556
      %577 = vmatmul.f32.gmra.mxu0 %v559
      %v578 = vpop.f32.mrf.mxu0
      %v579 = vadd.f32 0.0, %v578
      %580 = vdwg.mxu0
      %581 = vst.msk [vmem:[#allocation2] sm:$0xff] %vm514, %v579
      %582 = vrot.lane.b32.xlu0 %v509, 120
      %v583 = vpop.permute.xlu0 %582
      %584 = vrot.lane.b32.xlu0 %v509, 88
      %v585 = vpop.permute.xlu0 %584
      %v586 = vsel %vm514, %v583, 0
      %v588 = vsel %vm514, %v585, 0
      %590 = vmatpush.xpose.msra.mxu0 0.0
      %591 = vmatpush.xpose.msra.mxu0 0.0
      %592 = vmatpush.xpose.msra.mxu0 0.0
      %593 = vmatpush.xpose.msra.mxu0 0.0
      %594 = vmatpush.xpose.msra.mxu0 0.0
      %595 = vmatpush.xpose.msra.mxu0 0.0
      %596 = vmatpush.xpose.msra.mxu0 0.0
      %597 = vmatpush.xpose.msra.mxu0 0.0
      %598 = vmatpush.xpose.msra.mxu0 0.0
      %599 = vmatpush.xpose.msra.mxu0 0.0
      %600 = vmatpush.xpose.msra.mxu0 0.0
      %601 = vmatpush.xpose.msra.mxu0 0.0
      %602 = vmatpush.xpose.msra.mxu0 0.0
      %603 = vmatpush.xpose.msra.mxu0 0.0
      %604 = vmatpush.xpose.msra.mxu0 0.0
      %605 = vmatpush.xpose.msra.mxu0 %v588
      %606 = vmatmul.f32.gmra.mxu0 %v586
      %v607 = vpop.f32.mrf.mxu0
      %v608 = vadd.f32 0.0, %v607
      %609 = vdwg.mxu0
      %v610 = vmul.f32 %v608, 0.35355338
      %v611 = vadd.f32 %v610, %v541
      %v612 = vsel %vm514, %v611, -inf
      %613 = vmax.xlane.f32.xlu0 %v612
      %v614 = vpop.xlane.xlu0 %613
      %v615 = vsub.f32 %v611, %v614
      %v616 = vmul.f32 %v615, 1.442695
      %v617 = vpow.pop %v616
      %v618 = vsel %vm514, %v617, 0.0
      %619 = vadd.xlane.f32.xlu0 %v618
      %v620 = vpop.xlane.xlu0 %619
      %v621 = vrcp.pop %v620
      %v622 = vmul.f32 %v617, %v621
      %623 = vrot.lane.b32.xlu0 %v509, 56
      %v624 = vpop.permute.xlu0 %623
      %v627 = vsel %vm514, %v622, 0
      %629 = vmatpush.msra.mxu0 0.0
      %630 = vmatpush.msra.mxu0 0.0
      %631 = vmatpush.msra.mxu0 0.0
      %632 = vmatpush.msra.mxu0 0.0
      %633 = vmatpush.msra.mxu0 0.0
      %634 = vmatpush.msra.mxu0 0.0
      %635 = vmatpush.msra.mxu0 0.0
      %636 = vmatpush.msra.mxu0 0.0
      %637 = vmatpush.msra.mxu0 0.0
      %638 = vmatpush.msra.mxu0 0.0
      %639 = vmatpush.msra.mxu0 0.0
      %640 = vmatpush.msra.mxu0 0.0
      %641 = vmatpush.msra.mxu0 0.0
      %642 = vmatpush.msra.mxu0 0.0
      %643 = vmatpush.msra.mxu0 0.0
      %644 = vmatpush.msra.mxu0 %v624
      %645 = vmatmul.f32.gmra.mxu0 %v627
      %v646 = vpop.f32.mrf.mxu0
      %v647 = vadd.f32 0.0, %v646
      %648 = vdwg.mxu0
      %650 = vrot.lane.b32.xlu0 %v647, 8
      %v651 = vpop.permute.xlu0 %650
      %vm653 = vcmask 130112
      %654 = vst.msk [vmem:[#allocation2] sm:$0xff] %vm653, %v651
      %655 = vrot.lane.b32.xlu0 %v509, 112
      %v656 = vpop.permute.xlu0 %655
      %657 = vrot.lane.b32.xlu0 %v509, 80
      %v658 = vpop.permute.xlu0 %657
      %v659 = vsel %vm514, %v656, 0
      %v661 = vsel %vm514, %v658, 0
      %663 = vmatpush.xpose.msra.mxu0 0.0
      %664 = vmatpush.xpose.msra.mxu0 0.0
      %665 = vmatpush.xpose.msra.mxu0 0.0
      %666 = vmatpush.xpose.msra.mxu0 0.0
      %667 = vmatpush.xpose.msra.mxu0 0.0
      %668 = vmatpush.xpose.msra.mxu0 0.0
      %669 = vmatpush.xpose.msra.mxu0 0.0
      %670 = vmatpush.xpose.msra.mxu0 0.0
      %671 = vmatpush.xpose.msra.mxu0 0.0
      %672 = vmatpush.xpose.msra.mxu0 0.0
      %673 = vmatpush.xpose.msra.mxu0 0.0
      %674 = vmatpush.xpose.msra.mxu0 0.0
      %675 = vmatpush.xpose.msra.mxu0 0.0
      %676 = vmatpush.xpose.msra.mxu0 0.0
      %677 = vmatpush.xpose.msra.mxu0 0.0
      %678 = vmatpush.xpose.msra.mxu0 %v661
      %679 = vmatmul.f32.gmra.mxu0 %v659
      %v680 = vpop.f32.mrf.mxu0
      %v681 = vadd.f32 0.0, %v680
      %682 = vdwg.mxu0
      %v683 = vmul.f32 %v681, 0.35355338
      %v684 = vadd.f32 %v683, %v541
      %v685 = vsel %vm514, %v684, -inf
      %686 = vmax.xlane.f32.xlu0 %v685
      %v687 = vpop.xlane.xlu0 %686
      %v688 = vsub.f32 %v684, %v687
      %v689 = vmul.f32 %v688, 1.442695
      %v690 = vpow.pop %v689
      %v691 = vsel %vm514, %v690, 0.0
      %692 = vadd.xlane.f32.xlu0 %v691
      %v693 = vpop.xlane.xlu0 %692
      %v694 = vrcp.pop %v693
      %v695 = vmul.f32 %v690, %v694
      %696 = vrot.lane.b32.xlu0 %v509, 48
      %v697 = vpop.permute.xlu0 %696
      %v700 = vsel %vm514, %v695, 0
      %702 = vmatpush.msra.mxu0 0.0
      %703 = vmatpush.msra.mxu0 0.0
      %704 = vmatpush.msra.mxu0 0.0
      %705 = vmatpush.msra.mxu0 0.0
      %706 = vmatpush.msra.mxu0 0.0
      %707 = vmatpush.msra.mxu0 0.0
      %708 = vmatpush.msra.mxu0 0.0
      %709 = vmatpush.msra.mxu0 0.0
      %710 = vmatpush.msra.mxu0 0.0
      %711 = vmatpush.msra.mxu0 0.0
      %712 = vmatpush.msra.mxu0 0.0
      %713 = vmatpush.msra.mxu0 0.0
      %714 = vmatpush.msra.mxu0 0.0
      %715 = vmatpush.msra.mxu0 0.0
      %716 = vmatpush.msra.mxu0 0.0
      %717 = vmatpush.msra.mxu0 %v697
      %718 = vmatmul.f32.gmra.mxu0 %v700
      %v719 = vpop.f32.mrf.mxu0
      %v720 = vadd.f32 0.0, %v719
      %721 = vdwg.mxu0
      %723 = vrot.lane.b32.xlu0 %v720, 16
      %v724 = vpop.permute.xlu0 %723
      %vm726 = vcmask 195712
      %727 = vst.msk [vmem:[#allocation2] sm:$0xff] %vm726, %v724
      %728 = vrot.lane.b32.xlu0 %v509, 104
      %v729 = vpop.permute.xlu0 %728
      %730 = vrot.lane.b32.xlu0 %v509, 72
      %v731 = vpop.permute.xlu0 %730
      %v732 = vsel %vm514, %v729, 0
      %v734 = vsel %vm514, %v731, 0
      %736 = vmatpush.xpose.msra.mxu0 0.0
      %737 = vmatpush.xpose.msra.mxu0 0.0
      %738 = vmatpush.xpose.msra.mxu0 0.0
      %739 = vmatpush.xpose.msra.mxu0 0.0
      %740 = vmatpush.xpose.msra.mxu0 0.0
      %741 = vmatpush.xpose.msra.mxu0 0.0
      %742 = vmatpush.xpose.msra.mxu0 0.0
      %743 = vmatpush.xpose.msra.mxu0 0.0
      %744 = vmatpush.xpose.msra.mxu0 0.0
      %745 = vmatpush.xpose.msra.mxu0 0.0
      %746 = vmatpush.xpose.msra.mxu0 0.0
      %747 = vmatpush.xpose.msra.mxu0 0.0
      %748 = vmatpush.xpose.msra.mxu0 0.0
      %749 = vmatpush.xpose.msra.mxu0 0.0
      %750 = vmatpush.xpose.msra.mxu0 0.0
      %751 = vmatpush.xpose.msra.mxu0 %v734
      %752 = vmatmul.f32.gmra.mxu0 %v732
      %v753 = vpop.f32.mrf.mxu0
      %v754 = vadd.f32 0.0, %v753
      %755 = vdwg.mxu0
      %v756 = vmul.f32 %v754, 0.35355338
      %v757 = vadd.f32 %v756, %v541
      %v758 = vsel %vm514, %v757, -inf
      %759 = vmax.xlane.f32.xlu0 %v758
      %v760 = vpop.xlane.xlu0 %759
      %v761 = vsub.f32 %v757, %v760
      %v762 = vmul.f32 %v761, 1.442695
      %v763 = vpow.pop %v762
      %v764 = vsel %vm514, %v763, 0.0
      %765 = vadd.xlane.f32.xlu0 %v764
      %v766 = vpop.xlane.xlu0 %765
      %v767 = vrcp.pop %v766
      %v768 = vmul.f32 %v763, %v767
      %769 = vrot.lane.b32.xlu0 %v509, 40
      %v770 = vpop.permute.xlu0 %769
      %v773 = vsel %vm514, %v768, 0
      %775 = vmatpush.msra.mxu0 0.0
      %776 = vmatpush.msra.mxu0 0.0
      %777 = vmatpush.msra.mxu0 0.0
      %778 = vmatpush.msra.mxu0 0.0
      %779 = vmatpush.msra.mxu0 0.0
      %780 = vmatpush.msra.mxu0 0.0
      %781 = vmatpush.msra.mxu0 0.0
      %782 = vmatpush.msra.mxu0 0.0
      %783 = vmatpush.msra.mxu0 0.0
      %784 = vmatpush.msra.mxu0 0.0
      %785 = vmatpush.msra.mxu0 0.0
      %786 = vmatpush.msra.mxu0 0.0
      %787 = vmatpush.msra.mxu0 0.0
      %788 = vmatpush.msra.mxu0 0.0
      %789 = vmatpush.msra.mxu0 0.0
      %790 = vmatpush.msra.mxu0 %v770
      %791 = vmatmul.f32.gmra.mxu0 %v773
      %v792 = vpop.f32.mrf.mxu0
      %v793 = vadd.f32 0.0, %v792
      %794 = vdwg.mxu0
      %796 = vrot.lane.b32.xlu0 %v793, 24
      %v797 = vpop.permute.xlu0 %796
      %vm799 = vcmask 261312
      %800 = vst.msk [vmem:[#allocation2] sm:$0xff] %vm799, %v797
      %v801 = vld [vmem:[#allocation2] sm:$0xff]
      %v802 = vld [vmem:[%s4] sm:$0xff]
      %v803 = vld [vmem:[%s4 + $0x8] sm:$0xff]
      %v804 = vld [vmem:[%s4 + $0x10] sm:$0xff]
      %v805 = vld [vmem:[%s4 + $0x18] sm:$0xff]
      %v806 = vld [vmem:[%s5] sm:$0x1]
      %v808 = vperm.slane %v806, 0
      %v811 = vsel %vm487, %v801, 0
      %813 = vmatpush.msra.mxu0 0.0
      %814 = vmatpush.msra.mxu0 0.0
      %815 = vmatpush.msra.mxu0 0.0
      %816 = vmatpush.msra.mxu0 0.0
      %817 = vmatpush.msra.mxu0 0.0
      %818 = vmatpush.msra.mxu0 0.0
      %819 = vmatpush.msra.mxu0 0.0
      %820 = vmatpush.msra.mxu0 0.0
      %821 = vmatpush.msra.mxu0 0.0
      %822 = vmatpush.msra.mxu0 0.0
      %823 = vmatpush.msra.mxu0 0.0
      %824 = vmatpush.msra.mxu0 0.0
      %825 = vmatpush.msra.mxu0 %v805
      %826 = vmatpush.msra.mxu0 %v804
      %827 = vmatpush.msra.mxu0 %v803
      %828 = vmatpush.msra.mxu0 %v802
      %829 = vmatmul.f32.gmra.mxu0 %v811
      %v830 = vpop.f32.mrf.mxu0
      %v831 = vadd.f32 %v808, %v830
      %832 = vdwg.mxu0
      %v833 = vadd.f32 %v477, %v831
      %v834 = vld [vmem:[%s6] sm:$0x1]
      %v835 = vld [vmem:[%s7] sm:$0x1]
      %v836 = vsel %vm487, %v833, 0.0
      %837 = vadd.xlane.f32.xlu0 %v836
      %v838 = vpop.xlane.xlu0 %837
      %v839 = vrcp.pop 32.0
      %v840 = vmul.f32 32.0, %v839
      %v841 = vsub.f32 1.0, %v840
      %v842 = vmul.f32 %v839, %v841
      %v843 = vadd.f32 %v839, %v842
      %vm844 = vweird.f32 %v839
      %v845 = vsel %vm844, %v839, %v843
      %v846 = vmul.f32 %v838, %v845
      %v847 = vsub.f32 %v833, %v846
      %v848 = vmul.f32 %v847, %v847
      %v849 = vsel %vm487, %v848, 0.0
      %850 = vadd.xlane.f32.xlu0 %v849
      %v851 = vpop.xlane.xlu0 %850
      %v852 = vmul.f32 %v851, %v845
      %v853 = vadd.f32 %v852, 1e-12
      %v854 = vrsqrt.pop %v853
      %v855 = vmul.f32 %v854, %v853
      %v856 = vmul.f32 %v855, %v854
      %v857 = vmul.f32 0.5, %v856
      %v858 = vsub.f32 1.5, %v857
      %v859 = vmul.f32 %v854, %v858
      %vm860 = vweird.f32 %v853
      %vm861 = vweird.f32 %v854
      %vm862 = vmor %vm860, %vm861
      %v863 = vsel %vm862, %v854, %v859
      %v864 = vmul.f32 %v847, %v863
      %v866 = vperm.slane %v834, 0
      %v868 = vmul.f32 %v864, %v866
      %v870 = vperm.slane %v835, 0
      %v872 = vadd.f32 %v868, %v870
      %v873 = vld [vmem:[%s8] sm:$0xff]
      %v874 = vld [vmem:[%s8 + $0x8] sm:$0xff]
      %v875 = vld [vmem:[%s8 + $0x10] sm:$0xff]
      %v876 = vld [vmem:[%s8 + $0x18] sm:$0xff]
      %v877 = vld [vmem:[%s9] sm:$0x1]
      %v879 = vperm.slane %v877, 0
      %v882 = vsel %vm487, %v872, 0
      %884 = vmatpush.msra.mxu0 0.0
      %885 = vmatpush.msra.mxu0 0.0
      %886 = vmatpush.msra.mxu0 0.0
      %887 = vmatpush.msra.mxu0 0.0
      %888 = vmatpush.msra.mxu0 0.0
      %889 = vmatpush.msra.mxu0 0.0
      %890 = vmatpush.msra.mxu0 0.0
      %891 = vmatpush.msra.mxu0 0.0
      %892 = vmatpush.msra.mxu0 0.0
      %893 = vmatpush.msra.mxu0 0.0
      %894 = vmatpush.msra.mxu0 0.0
      %895 = vmatpush.msra.mxu0 0.0
      %896 = vmatpush.msra.mxu0 %v876
      %897 = vmatpush.msra.mxu0 %v875
      %898 = vmatpush.msra.mxu0 %v874
      %899 = vmatpush.msra.mxu0 %v873
      %900 = vmatmul.f32.gmra.mxu0 %v882
      %v901 = vpop.f32.mrf.mxu0
      %v902 = vadd.f32 %v879, %v901
      %903 = vdwg.mxu0
      %v904 = vmul.f32 %v902, 0.5
      %v905 = vmul.f32 %v902, 0.044715
      %v906 = vmul.f32 %v905, %v902
      %v907 = vmul.f32 %v906, %v902
      %v908 = vadd.f32 %v902, %v907
      %v909 = vmul.f32 %v908, 0.7978846
      %v910 = vtanh.pop %v909
      %v911 = vadd.f32 %v910, 1.0
      %v912 = vmul.f32 %v904, %v911
      %v913 = vld [vmem:[%s10] sm:$0xff]
      %v914 = vld [vmem:[%s10 + $0x8] sm:$0xff]
      %v915 = vld [vmem:[%s10 + $0x10] sm:$0xff]
      %v916 = vld [vmem:[%s10 + $0x18] sm:$0xff]
      %v917 = vld [vmem:[%s10 + $0x20] sm:$0xff]
      %v918 = vld [vmem:[%s10 + $0x28] sm:$0xff]
      %v919 = vld [vmem:[%s10 + $0x30] sm:$0xff]
      %v920 = vld [vmem:[%s10 + $0x38] sm:$0xff]
      %v921 = vld [vmem:[%s11] sm:$0x1]
      %v923 = vperm.slane %v921, 0
      %vm925 = vcmask 523264
      %v927 = vsel %vm925, %v912, 0
      %929 = vmatpush.msra.mxu0 0.0
      %930 = vmatpush.msra.mxu0 0.0
      %931 = vmatpush.msra.mxu0 0.0
      %932 = vmatpush.msra.mxu0 0.0
      %933 = vmatpush.msra.mxu0 0.0
      %934 = vmatpush.msra.mxu0 0.0
      %935 = vmatpush.msra.mxu0 0.0
      %936 = vmatpush.msra.mxu0 0.0
      %937 = vmatpush.msra.mxu0 %v920
      %938 = vmatpush.msra.mxu0 %v919
      %939 = vmatpush.msra.mxu0 %v918
      %940 = vmatpush.msra.mxu0 %v917
      %941 = vmatpush.msra.mxu0 %v916
      %942 = vmatpush.msra.mxu0 %v915
      %943 = vmatpush.msra.mxu0 %v914
      %944 = vmatpush.msra.mxu0 %v913
      %945 = vmatmul.f32.gmra.mxu0 %v927
      %v946 = vpop.f32.mrf.mxu0
      %v947 = vadd.f32 %v923, %v946
      %948 = vdwg.mxu0
      %v949 = vadd.f32 %v872, %v947
      %v950 = vld [vmem:[%s12] sm:$0x1]
      %v951 = vld [vmem:[%s13] sm:$0x1]
      %v952 = vsel %vm487, %v949, 0.0
      %953 = vadd.xlane.f32.xlu0 %v952
      %v954 = vpop.xlane.xlu0 %953
      %v955 = vmul.f32 %v954, %v845
      %v956 = vsub.f32 %v949, %v955
      %v957 = vmul.f32 %v956, %v956
      %v958 = vsel %vm487, %v957, 0.0
      %959 = vadd.xlane.f32.xlu0 %v958
      %v960 = vpop.xlane.xlu0 %959
      %v961 = vmul.f32 %v960, %v845
      %v962 = vadd.f32 %v961, 1e-12
      %v963 = vrsqrt.pop %v962
      %v964 = vmul.f32 %v963, %v962
      %v965 = vmul.f32 %v964, %v963
      %v966 = vmul.f32 0.5, %v965
      %v967 = vsub.f32 1.5, %v966
      %v968 = vmul.f32 %v963, %v967
      %vm969 = vweird.f32 %v962
      %vm970 = vweird.f32 %v963
      %vm971 = vmor %vm969, %vm970
      %v972 = vsel %vm971, %v963, %v968
      %v973 = vmul.f32 %v956, %v972
      %v975 = vperm.slane %v950, 0
      %v977 = vmul.f32 %v973, %v975
      %v979 = vperm.slane %v951, 0
      %v981 = vadd.f32 %v977, %v979
      %982 = vst.msk [vmem:[%s476] sm:$0xff] %vm487, %v981
      %p983 = scmp.lt.s32.totalorder %s25, 1
      %s984 = scalar_select %p983, %s25, 1
      %s985 = smul.addr %s984, 8
      %s986 = scalar_lea.vmem %s14, %s985
      // Predicated region
      $region77: #{sentiment_classifier_forward.5} parent=75 // pred_check
        %p987 = pneg %p347
      $region78: #{sentiment_classifier_forward.5} parent=75 // pred_check_branch
        %989 = sbr.rel (%p987) target = $region80
      $region79: #{sentiment_classifier_forward.5} parent=75 // pred_region
        _
      $region80: #{sentiment_classifier_forward.5} parent=75 // pred_fallthru
        _
    $region76: #{sentiment_classifier_forward.5} parent=5 // pred_fallthru
      _
    %p990 = scmp.le.s32.totalorder 2, %s20
    // Predicated region
    $region81: #{sentiment_classifier_forward.5} parent=5 // pred_check
      %p991 = pneg %p990
    $region82: #{sentiment_classifier_forward.5} parent=5 // pred_check_branch
      %993 = sbr.rel (%p991) target = $region84
    $region83: #{sentiment_classifier_forward.5} parent=5 // pred_region
      %s994 = ssub.s32 %s20, 2
      // Predicated region
      $region85: #{sentiment_classifier_forward.5} parent=83 // pred_check
        %p995 = pneg %p353
      $region86: #{sentiment_classifier_forward.5} parent=83 // pred_check_branch
        %997 = sbr.rel (%p995) target = $region88
      $region87: #{sentiment_classifier_forward.5} parent=83 // pred_region
        %p998 = scmp.lt.s32.totalorder %s26, 1
        %s999 = scalar_select %p998, %s26, 1
        %s1000 = smul.addr %s999, 8
        %s1001 = scalar_lea.vmem %s14, %s1000
      $region88: #{sentiment_classifier_forward.5} parent=83 // pred_fallthru
        _
    $region84: #{sentiment_classifier_forward.5} parent=5 // pred_fallthru
      _
  $region6: #{sentiment_classifier_forward.5} parent=0 // loop_footer
    %s24 = sadd.s32 1, %s20
  $region7: #{sentiment_classifier_forward.5} parent=0 // loop_footer_branch
    %19 = sbr.rel target = $region3
  $region8: #{sentiment_classifier_forward.5} parent=0 // loop_exit
    _

</llo_original>
